<compile_context>
chip_gen: v7x
topology: tpu7x:2x2x1
jax: 0.10.0
libtpu: 0.0.40
codegen_flags: <defaults>
</compile_context>

<pallas_src>
import functools

import numpy as np

import jax
import jax.numpy as jnp
from jax.experimental import pallas as pl
from jax.experimental.pallas import tpu as pltpu


def _round8(n):
    return (n + 7) // 8 * 8


def _silu(v):
    return v * jax.nn.sigmoid(v)


# ------------------------------ fused kernel ------------------------------- #

def _c3k2_faster_cglu_kernel(x_ref, m_ref, w_ref, b_ref, o_ref,
                             maskb_ref, patch_ref, ycat_ref, *,
                             img_w, c, hidden_pad, CB, wl, bl):
    HWs = x_ref.shape[-1]
    x = x_ref[0]                                   # (C1, HWs) spatial-in-lanes

    def wslab(name):                               # static window of the slab
        o, r, k = wl[name]
        return w_ref[o:o + r, 0:k]

    def bslab(name):
        o, r = bl[name]
        return b_ref[o:o + r, :]

    # ---- hoisted 3x3 border masks: broadcast each non-centre tap row to CB
    # sublanes ONCE, park in VMEM, reuse for both 3x3 stages -----------------
    for ti in range(9):
        if ti == 4:
            continue
        si = ti if ti < 4 else ti - 1
        maskb_ref[si * CB:(si + 1) * CB, :] = jnp.broadcast_to(
            m_ref[ti:ti + 1, :], (CB, HWs))

    if c < CB or hidden_pad < CB:                  # keep unused tap rows finite
        patch_ref[...] = jnp.zeros(patch_ref.shape, patch_ref.dtype)

    def write_taps(z):
        """Store the 9 shifted+masked 3x3 tap images of z (rows<=CB) into
        patch_ref at 8-row-aligned offsets (tap-major layout, stride CB)."""
        zr = z.shape[0]
        for dy in range(3):
            for dx in range(3):
                ti = dy * 3 + dx
                row = ti * CB
                if ti == 4:                        # centre tap: no shift/mask
                    patch_ref[row:row + zr, :] = z
                else:
                    d = (dy - 1) * img_w + (dx - 1)
                    si = ti if ti < 4 else ti - 1
                    s = pltpu.roll(z, shift=(-d) % HWs, axis=1)
                    patch_ref[row:row + zr, :] = (
                        s * maskb_ref[si * CB:si * CB + zr, :])

    # ---- cv1: 1x1 conv (+folded BN) + SiLU ---------------------------------
    y = _silu(jnp.dot(wslab("cv1"), x, preferred_element_type=jnp.float32)
              + bslab("cv1"))                      # (2c, HWs)
    y1 = y[c:2 * c]                                # 8-row-aligned view

    # ---- Faster_Block_CGLU --------------------------------------------------
    # Partial_conv3 folded with the pass-through channels: one im2col matmul
    # whose weight has identity rows (centre tap) for channels >= dc, so its
    # output IS x_sm (no unaligned slices / concats).
    write_taps(y1)                                 # patch <- taps(y1)
    x_sm = jnp.dot(wslab("pconv"), patch_ref[...],
                   preferred_element_type=jnp.float32)           # (c, HWs)

    # ConvolutionalGLU (hidden zero-padded to hidden_pad -> aligned chunk)
    fc1 = (jnp.dot(wslab("fc1"), x_sm, preferred_element_type=jnp.float32)
           + bslab("fc1"))                         # (2*hidden_pad, HWs)
    xh = fc1[:hidden_pad]                          # aligned split (offset 0)
    v = fc1[hidden_pad:]                           # aligned split (offset 8)

    # depthwise 3x3 as a second im2col matmul (tap-diagonal weight), reusing
    # the tap scratch -> MXU instead of VALU broadcast-multiplies.
    write_taps(xh)
    acc = (jnp.dot(wslab("dw"), patch_ref[...],
                   preferred_element_type=jnp.float32)
           + bslab("dw"))                          # (hidden_pad, HWs)
    a = jax.nn.gelu(acc, approximate=True) * v
    g = (jnp.dot(wslab("fc2"), a, preferred_element_type=jnp.float32)
         + bslab("fc2"))                           # (c, HWs)
    blk = y1 + (x_sm + g)        # CGLU internal residual + block shortcut

    # ---- concat via aligned scratch stores + cv2 (1x1 + folded BN + SiLU) ---
    ycat_ref[0:2 * c, :] = y                       # y0 | y1
    ycat_ref[2 * c:3 * c, :] = blk
    out = _silu(jnp.dot(wslab("cv2"), ycat_ref[...],
                        preferred_element_type=jnp.float32)
                + bslab("cv2"))                    # (C2, HWs)
    o_ref[0] = out.astype(o_ref.dtype)


# ------------------------------- wrapper ------------------------------------ #

def _make_tap_masks(H, W):
    """(9, H*W) f32 validity masks for a 3x3 SAME conv, taps (dy, dx) row-major."""
    m = np.zeros((9, H, W), np.float32)
    for dy in range(3):
        for dx in range(3):
            h0, h1 = max(0, 1 - dy), min(H, H + 1 - dy)
            w0, w1 = max(0, 1 - dx), min(W, W + 1 - dx)
            m[dy * 3 + dx, h0:h1, w0:w1] = 1.0
    return m.reshape(9, H * W)


def _weight_layout(C1, C2, c, hidden_pad, CB, n_blk=1):
    """Row/col layout of the packed weight and bias slabs (8-row aligned)."""
    wl, off = {}, 0
    for name, r, k in [("cv1", 2 * c, C1),
                       ("pconv", c, 9 * CB),
                       ("fc1", 2 * hidden_pad, c),
                       ("dw", hidden_pad, 9 * CB),
                       ("fc2", c, hidden_pad),
                       ("cv2", C2, (2 + n_blk) * c)]:
        wl[name] = (off, r, k)
        off += _round8(r)
    wrows = off
    wcols = max(k for (_, _, k) in wl.values())
    bl, off = {}, 0
    for name, r in [("cv1", 2 * c), ("fc1", 2 * hidden_pad),
                    ("dw", hidden_pad), ("fc2", c), ("cv2", C2)]:
        bl[name] = (off, r)
        off += _round8(r)
    brows = off
    return wl, wrows, wcols, bl, brows


def pack_params(raw, *, C1, C2, c, dc, hidden, hidden_pad, CB, n_blk=1):
    """Pack all layer parameters into one weight slab and one bias slab."""
    wl, wrows, wcols, bl, brows = _weight_layout(C1, C2, c, hidden_pad, CB, n_blk)
    Wsl = np.zeros((wrows, wcols), np.float32)
    Bsl = np.zeros((brows, 1), np.float32)

    def put_w(name, mat):
        o, _, _ = wl[name]
        Wsl[o:o + mat.shape[0], :mat.shape[1]] = mat

    def put_b(name, vec):
        o, _ = bl[name]
        Bsl[o:o + vec.shape[0], 0] = vec

    # cv1 / cv2: folded-BN 1x1 convs as (Cout, Cin)
    put_w("cv1", np.asarray(raw["cv1_w"]).reshape(2 * c, C1))
    put_b("cv1", np.asarray(raw["cv1_b"]))
    put_w("cv2", np.asarray(raw["cv2_w"]).reshape(C2, (2 + n_blk) * c))
    put_b("cv2", np.asarray(raw["cv2_b"]))

    # Partial_conv3 folded with pass-through identity: (c, 9*CB), tap-major
    pw = np.asarray(raw["pconv_w"])                       # (dc, dc, 3, 3)
    pfull = np.zeros((c, 9 * CB), np.float32)
    for dy in range(3):
        for dx in range(3):
            ti = dy * 3 + dx
            pfull[:dc, ti * CB:ti * CB + dc] = pw[:, :, dy, dx]
    for i in range(dc, c):
        pfull[i, 4 * CB + i] = 1.0                        # identity, centre tap
    put_w("pconv", pfull)

    # fc1: (2*hidden, c) -> two zero-padded halves of hidden_pad rows each
    f1 = np.asarray(raw["fc1_w"]).reshape(2 * hidden, c)
    f1b = np.asarray(raw["fc1_b"])
    f1p = np.zeros((2 * hidden_pad, c), np.float32)
    f1p[:hidden] = f1[:hidden]
    f1p[hidden_pad:hidden_pad + hidden] = f1[hidden:]
    f1bp = np.zeros((2 * hidden_pad,), np.float32)
    f1bp[:hidden] = f1b[:hidden]
    f1bp[hidden_pad:hidden_pad + hidden] = f1b[hidden:]
    put_w("fc1", f1p)
    put_b("fc1", f1bp)

    # depthwise 3x3 as (hidden_pad, 9*CB) tap-diagonal matmul weight
    dwv = np.asarray(raw["dw_w"]).reshape(hidden, 9)      # (hidden,1,3,3)->(hidden,9)
    dfull = np.zeros((hidden_pad, 9 * CB), np.float32)
    for ti in range(9):
        for i in range(hidden):
            dfull[i, ti * CB + i] = dwv[i, ti]
    put_w("dw", dfull)
    dbp = np.zeros((hidden_pad,), np.float32)
    dbp[:hidden] = np.asarray(raw["dw_b"])
    put_b("dw", dbp)

    # fc2: (c, hidden) -> zero-padded columns to (c, hidden_pad)
    f2 = np.asarray(raw["fc2_w"]).reshape(c, hidden)
    f2p = np.zeros((c, hidden_pad), np.float32)
    f2p[:, :hidden] = f2
    put_w("fc2", f2p)
    put_b("fc2", np.asarray(raw["fc2_b"]))

    return jnp.asarray(Wsl), jnp.asarray(Bsl), wl, bl


def _default_groups(N):
    """Grid size: 2 parallel steps on dual-TC v7x, 1 step (batch flattened
    into lanes) on single-TC v5e/v6e."""
    try:
        kind = jax.devices()[0].device_kind.lower()
    except Exception:
        kind = ""
    n_tc = 2 if "7" in kind else 1
    g = n_tc if (n_tc > 1 and N % n_tc == 0) else 1
    return max(1, min(g, N))


def c3k2_faster_cglu_infer_forward(x_nchw, w_slab, b_slab, wl, bl, *,
                                   c, hidden_pad, CB, C2, groups=None):
    N, C1, H, W = x_nchw.shape
    HW = H * W
    if groups is None:
        groups = _default_groups(N)
    G = N // groups
    HWs = G * HW

    # (C, G*HW) lane-dense layout per grid step: images concatenated along the
    # lane axis.  Roll wraparound across image boundaries only hits masked
    # border positions, so the 3x3 taps stay correct.
    x = x_nchw.reshape(groups, G, C1, HW).transpose(0, 2, 1, 3).reshape(
        groups, C1, HWs)
    masks = jnp.asarray(np.tile(_make_tap_masks(H, W), (1, G)))   # (9, G*HW)

    kern = functools.partial(_c3k2_faster_cglu_kernel, img_w=W, c=c,
                             hidden_pad=hidden_pad, CB=CB, wl=wl, bl=bl)

    out = pl.pallas_call(
        kern,
        out_shape=jax.ShapeDtypeStruct((groups, C2, HWs), x_nchw.dtype),
        grid=(groups,),
        in_specs=[pl.BlockSpec((1, C1, HWs), lambda g: (g, 0, 0)),
                  pl.BlockSpec(masks.shape, lambda g: (0, 0)),
                  pl.BlockSpec(w_slab.shape, lambda g: (0, 0)),
                  pl.BlockSpec(b_slab.shape, lambda g: (0, 0))],
        out_specs=pl.BlockSpec((1, C2, HWs), lambda g: (g, 0, 0)),
        scratch_shapes=[pltpu.VMEM((8 * CB, HWs), jnp.float32),   # mask bcast
                        pltpu.VMEM((9 * CB, HWs), jnp.float32),   # im2col taps
                        pltpu.VMEM((3 * c, HWs), jnp.float32)],   # cv2 input
        compiler_params=pltpu.CompilerParams(
            dimension_semantics=("parallel",)),
    )(x, masks, w_slab, b_slab)

    return out.reshape(groups, C2, G, HW).transpose(0, 2, 1, 3).reshape(
        N, C2, H, W)


# --------------------------- parameter construction ------------------------- #

def fold_bn_conv(key, cout, cin, k, eps=1e-5):
    """Conv2d(bias=False) + BatchNorm2d folded to effective (OIHW weight, bias)."""
    k1, k2, k3, k4, k5 = jax.random.split(key, 5)
    w = jax.random.normal(k1, (cout, cin, k, k), jnp.float32) * 0.1
    gamma = jax.random.uniform(k2, (cout,), jnp.float32, 0.5, 1.5)
    beta = jax.random.normal(k3, (cout,), jnp.float32) * 0.1
    mean = jax.random.normal(k4, (cout,), jnp.float32) * 0.1
    var = jax.random.uniform(k5, (cout,), jnp.float32, 0.5, 1.5)
    scale = gamma / jnp.sqrt(var + eps)
    return w * scale[:, None, None, None], beta - mean * scale


def plain_conv(key, cout, cin_per_group, k, bias=True):
    k1, k2 = jax.random.split(key)
    w = jax.random.normal(k1, (cout, cin_per_group, k, k), jnp.float32) * 0.1
    b = jax.random.normal(k2, (cout,), jnp.float32) * 0.1 if bias else None
    return w, b


# ---------------------------- pure-JAX reference ----------------------------- #

def _conv_nchw(x, w, b=None, groups=1, padding="VALID"):
    y = jax.lax.conv_general_dilated(
        x, w, (1, 1), padding,
        dimension_numbers=("NCHW", "OIHW", "NCHW"),
        feature_group_count=groups,
        precision=jax.lax.Precision.HIGHEST)
    if b is not None:
        y = y + b.reshape(1, -1, 1, 1)
    return y


def c3k2_faster_cglu_reference(x, raw, *, c1_split, c2_split, dc, hidden):
    y = _conv_nchw(x, raw["cv1_w"], raw["cv1_b"])
    y = y * jax.nn.sigmoid(y)
    y0 = y[:, :c1_split]
    y1 = y[:, c1_split:c1_split + c2_split]
    # Faster_Block_CGLU
    xp = _conv_nchw(y1[:, :dc], raw["pconv_w"], None, padding="SAME")
    x_sm = jnp.concatenate([xp, y1[:, dc:]], axis=1)
    t = _conv_nchw(x_sm, raw["fc1_w"], raw["fc1_b"])
    xh, v = t[:, :hidden], t[:, hidden:]
    dw = _conv_nchw(xh, raw["dw_w"], raw["dw_b"], groups=hidden, padding="SAME")
    a = jax.nn.gelu(dw, approximate=True) * v
    g = _conv_nchw(a, raw["fc2_w"], raw["fc2_b"])
    blk = y1 + (x_sm + g)
    ycat = jnp.concatenate([y0, y1, blk], axis=1)
    out = _conv_nchw(ycat, raw["cv2_w"], raw["cv2_b"])
    return out * jax.nn.sigmoid(out)


# ----------------------------------- main ------------------------------------ #

if __name__ == "__main__":
    # C3k2_Faster_CGLU_infer(c1=16, c2=16, n=1, c3k=False, e=0.5)
    C1_IN, C2_OUT, N_BLK, E = 16, 16, 1, 0.5
    c = int(C2_OUT * E)              # block hidden channels = 8
    dc = c // 4                      # Partial_conv3 channels (n_div=4) = 2
    hidden = int(2 * c / 3)          # ConvolutionalGLU hidden width = 5
    hidden_pad = _round8(hidden)     # zero-padded to 8 for aligned splits
    CB = max(_round8(c), hidden_pad) # tap-block row stride = 8
    # TODO(synk): pruned checkpoints may have unequal (self.c1, self.c2) split
    #             sizes; the standard (c, c) split is assumed here.
    c1_split, c2_split = c, c
    N, H, W = 2, 16, 16

    key = jax.random.PRNGKey(0)
    k_x, k_cv1, k_pc, k_fc1, k_dw, k_fc2, k_cv2 = jax.random.split(key, 7)
    x = jax.random.normal(k_x, (N, C1_IN, H, W), jnp.float32)

    cv1_w, cv1_b = fold_bn_conv(k_cv1, 2 * c, C1_IN, 1)
    pconv_w, _ = plain_conv(k_pc, dc, dc, 3, bias=False)
    fc1_w, fc1_b = plain_conv(k_fc1, 2 * hidden, c, 1)
    dw_w, dw_b = plain_conv(k_dw, hidden, 1, 3)          # depthwise (groups=hidden)
    fc2_w, fc2_b = plain_conv(k_fc2, c, hidden, 1)
    cv2_w, cv2_b = fold_bn_conv(k_cv2, C2_OUT, (2 + N_BLK) * c, 1)

    raw = dict(cv1_w=cv1_w, cv1_b=cv1_b, pconv_w=pconv_w,
               fc1_w=fc1_w, fc1_b=fc1_b, dw_w=dw_w, dw_b=dw_b,
               fc2_w=fc2_w, fc2_b=fc2_b, cv2_w=cv2_w, cv2_b=cv2_b)

    w_slab, b_slab, wl, bl = pack_params(
        raw, C1=C1_IN, C2=C2_OUT, c=c, dc=dc, hidden=hidden,
        hidden_pad=hidden_pad, CB=CB, n_blk=N_BLK)

    out = c3k2_faster_cglu_infer_forward(
        x, w_slab, b_slab, wl, bl, c=c, hidden_pad=hidden_pad, CB=CB, C2=C2_OUT)
    out = jax.block_until_ready(out)

    ref = c3k2_faster_cglu_reference(
        x, raw, c1_split=c1_split, c2_split=c2_split, dc=dc, hidden=hidden)
    ref = jax.block_until_ready(ref)

    assert out.shape == (N, C2_OUT, H, W), out.shape
    max_err = float(jnp.max(jnp.abs(out - ref)))
    assert jnp.allclose(out, ref, atol=5e-3, rtol=5e-3), max_err
    print("KERNEL_OK")
</pallas_src>

<mosaic_0001>
module attributes {stable_mosaic.version = 11 : i64} {
  func.func @_c3k2_faster_cglu_kernel(%arg0: i32, %arg1: memref<1x16x512xf32, #tpu.memory_space<vmem>>, %arg2: memref<9x512xf32, #tpu.memory_space<vmem>>, %arg3: memref<72x72xf32, #tpu.memory_space<vmem>>, %arg4: memref<64x1xf32, #tpu.memory_space<vmem>>, %arg5: memref<1x16x512xf32, #tpu.memory_space<vmem>>, %arg6: memref<64x512xf32, #tpu.memory_space<vmem>>, %arg7: memref<72x512xf32, #tpu.memory_space<vmem>>, %arg8: memref<24x512xf32, #tpu.memory_space<vmem>>) attributes {dimension_semantics = [#tpu.dimension_semantics<parallel>], iteration_bounds = array<i64: 1>, scalar_prefetch = 0 : i64, scratch_operands = 3 : i64, tpu.core_type = #tpu.core_type<tc>, window_params = [{transform_indices = @transform_0, window_bounds = array<i64: 1, 16, 512>}, {pipeline_mode = #tpu.pipeline_mode<synchronous>, transform_indices = @transform_1, window_bounds = array<i64: 9, 512>}, {pipeline_mode = #tpu.pipeline_mode<synchronous>, transform_indices = @transform_2, window_bounds = array<i64: 72, 72>}, {pipeline_mode = #tpu.pipeline_mode<synchronous>, transform_indices = @transform_3, window_bounds = array<i64: 64, 1>}, {transform_indices = @transform_4, window_bounds = array<i64: 1, 16, 512>}]} {
    %c0 = arith.constant 0 : index
    %c0_0 = arith.constant 0 : index
    %c0_1 = arith.constant 0 : index
    %0 = vector.load %arg1[%c0, %c0_0, %c0_1] : memref<1x16x512xf32, #tpu.memory_space<vmem>>, vector<1x16x512xf32>
    %1 = vector.shape_cast %0 : vector<1x16x512xf32> to vector<16x512xf32>
    %c0_2 = arith.constant 0 : index
    %c0_3 = arith.constant 0 : index
    %2 = vector.load %arg2[%c0_2, %c0_3] : memref<9x512xf32, #tpu.memory_space<vmem>>, vector<1x512xf32>
    %3 = vector.shape_cast %2 : vector<1x512xf32> to vector<1x512xf32>
    %4 = vector.broadcast %3 : vector<1x512xf32> to vector<8x512xf32>
    %c0_4 = arith.constant 0 : index
    %c0_5 = arith.constant 0 : index
    %5 = vector.load %arg6[%c0_4, %c0_5] : memref<64x512xf32, #tpu.memory_space<vmem>>, vector<8x512xf32>
    tpu.vector_store %arg6[%c0_4, %c0_5], %4 {strides = array<i32>} : memref<64x512xf32, #tpu.memory_space<vmem>>, vector<8x512xf32>,
    %c1 = arith.constant 1 : index
    %c0_6 = arith.constant 0 : index
    %6 = vector.load %arg2[%c1, %c0_6] : memref<9x512xf32, #tpu.memory_space<vmem>>, vector<1x512xf32>
    %7 = vector.shape_cast %6 : vector<1x512xf32> to vector<1x512xf32>
    %8 = vector.broadcast %7 : vector<1x512xf32> to vector<8x512xf32>
    %c8 = arith.constant 8 : index
    %c0_7 = arith.constant 0 : index
    %9 = vector.load %arg6[%c8, %c0_7] : memref<64x512xf32, #tpu.memory_space<vmem>>, vector<8x512xf32>
    tpu.vector_store %arg6[%c8, %c0_7], %8 {strides = array<i32>} : memref<64x512xf32, #tpu.memory_space<vmem>>, vector<8x512xf32>,
    %c2 = arith.constant 2 : index
    %c0_8 = arith.constant 0 : index
    %10 = vector.load %arg2[%c2, %c0_8] : memref<9x512xf32, #tpu.memory_space<vmem>>, vector<1x512xf32>
    %11 = vector.shape_cast %10 : vector<1x512xf32> to vector<1x512xf32>
    %12 = vector.broadcast %11 : vector<1x512xf32> to vector<8x512xf32>
    %c16 = arith.constant 16 : index
    %c0_9 = arith.constant 0 : index
    %13 = vector.load %arg6[%c16, %c0_9] : memref<64x512xf32, #tpu.memory_space<vmem>>, vector<8x512xf32>
    tpu.vector_store %arg6[%c16, %c0_9], %12 {strides = array<i32>} : memref<64x512xf32, #tpu.memory_space<vmem>>, vector<8x512xf32>,
    %c3 = arith.constant 3 : index
    %c0_10 = arith.constant 0 : index
    %14 = vector.load %arg2[%c3, %c0_10] : memref<9x512xf32, #tpu.memory_space<vmem>>, vector<1x512xf32>
    %15 = vector.shape_cast %14 : vector<1x512xf32> to vector<1x512xf32>
    %16 = vector.broadcast %15 : vector<1x512xf32> to vector<8x512xf32>
    %c24 = arith.constant 24 : index
    %c0_11 = arith.constant 0 : index
    %17 = vector.load %arg6[%c24, %c0_11] : memref<64x512xf32, #tpu.memory_space<vmem>>, vector<8x512xf32>
    tpu.vector_store %arg6[%c24, %c0_11], %16 {strides = array<i32>} : memref<64x512xf32, #tpu.memory_space<vmem>>, vector<8x512xf32>,
    %c5 = arith.constant 5 : index
    %c0_12 = arith.constant 0 : index
    %18 = vector.load %arg2[%c5, %c0_12] : memref<9x512xf32, #tpu.memory_space<vmem>>, vector<1x512xf32>
    %19 = vector.shape_cast %18 : vector<1x512xf32> to vector<1x512xf32>
    %20 = vector.broadcast %19 : vector<1x512xf32> to vector<8x512xf32>
    %c32 = arith.constant 32 : index
    %c0_13 = arith.constant 0 : index
    %21 = vector.load %arg6[%c32, %c0_13] : memref<64x512xf32, #tpu.memory_space<vmem>>, vector<8x512xf32>
    tpu.vector_store %arg6[%c32, %c0_13], %20 {strides = array<i32>} : memref<64x512xf32, #tpu.memory_space<vmem>>, vector<8x512xf32>,
    %c6 = arith.constant 6 : index
    %c0_14 = arith.constant 0 : index
    %22 = vector.load %arg2[%c6, %c0_14] : memref<9x512xf32, #tpu.memory_space<vmem>>, vector<1x512xf32>
    %23 = vector.shape_cast %22 : vector<1x512xf32> to vector<1x512xf32>
    %24 = vector.broadcast %23 : vector<1x512xf32> to vector<8x512xf32>
    %c40 = arith.constant 40 : index
    %c0_15 = arith.constant 0 : index
    %25 = vector.load %arg6[%c40, %c0_15] : memref<64x512xf32, #tpu.memory_space<vmem>>, vector<8x512xf32>
    tpu.vector_store %arg6[%c40, %c0_15], %24 {strides = array<i32>} : memref<64x512xf32, #tpu.memory_space<vmem>>, vector<8x512xf32>,
    %c7 = arith.constant 7 : index
    %c0_16 = arith.constant 0 : index
    %26 = vector.load %arg2[%c7, %c0_16] : memref<9x512xf32, #tpu.memory_space<vmem>>, vector<1x512xf32>
    %27 = vector.shape_cast %26 : vector<1x512xf32> to vector<1x512xf32>
    %28 = vector.broadcast %27 : vector<1x512xf32> to vector<8x512xf32>
    %c48 = arith.constant 48 : index
    %c0_17 = arith.constant 0 : index
    %29 = vector.load %arg6[%c48, %c0_17] : memref<64x512xf32, #tpu.memory_space<vmem>>, vector<8x512xf32>
    tpu.vector_store %arg6[%c48, %c0_17], %28 {strides = array<i32>} : memref<64x512xf32, #tpu.memory_space<vmem>>, vector<8x512xf32>,
    %c8_18 = arith.constant 8 : index
    %c0_19 = arith.constant 0 : index
    %30 = vector.load %arg2[%c8_18, %c0_19] : memref<9x512xf32, #tpu.memory_space<vmem>>, vector<1x512xf32>
    %31 = vector.shape_cast %30 : vector<1x512xf32> to vector<1x512xf32>
    %32 = vector.broadcast %31 : vector<1x512xf32> to vector<8x512xf32>
    %c56 = arith.constant 56 : index
    %c0_20 = arith.constant 0 : index
    %33 = vector.load %arg6[%c56, %c0_20] : memref<64x512xf32, #tpu.memory_space<vmem>>, vector<8x512xf32>
    tpu.vector_store %arg6[%c56, %c0_20], %32 {strides = array<i32>} : memref<64x512xf32, #tpu.memory_space<vmem>>, vector<8x512xf32>,
    %c0_21 = arith.constant 0 : index
    %c0_22 = arith.constant 0 : index
    %34 = vector.load %arg3[%c0_21, %c0_22] : memref<72x72xf32, #tpu.memory_space<vmem>>, vector<16x16xf32>
    %cst = arith.constant dense<0.000000e+00> : vector<16x512xf32>
    %35 = tpu.matmul %34, %1, %cst {dimension_numbers = #tpu.dot_dimension_numbers<[1], [0], [0], [1], [0, 0, 1, 1], [], []>} : vector<16x16xf32>, vector<16x512xf32>, vector<16x512xf32> -> vector<16x512xf32>
    %c0_23 = arith.constant 0 : index
    %c0_24 = arith.constant 0 : index
    %36 = vector.load %arg4[%c0_23, %c0_24] : memref<64x1xf32, #tpu.memory_space<vmem>>, vector<16x1xf32>
    %37 = vector.broadcast %36 : vector<16x1xf32> to vector<16x512xf32>
    %38 = arith.addf %35, %37 : vector<16x512xf32>
    %39 = arith.negf %38 : vector<16x512xf32>
    %40 = math.exp %39 : vector<16x512xf32>
    %cst_25 = arith.constant 1.000000e+00 : f32
    %41 = vector.broadcast %cst_25 : f32 to vector<16x512xf32>
    %42 = arith.addf %41, %40 : vector<16x512xf32>
    %43 = arith.divf %41, %42 : vector<16x512xf32>
    %44 = arith.mulf %38, %43 : vector<16x512xf32>
    %45 = vector.extract_strided_slice %44 {offsets = [8, 0], sizes = [8, 512], strides = [1, 1]} : vector<16x512xf32> to vector<8x512xf32>
    %c17_i32 = arith.constant 17 : i32
    %46 = tpu.dynamic_rotate %45 by %c17_i32 dim 1 : vector<8x512xf32>, i32 -> vector<8x512xf32>
    %c0_26 = arith.constant 0 : index
    %c0_27 = arith.constant 0 : index
    %47 = vector.load %arg6[%c0_26, %c0_27] : memref<64x512xf32, #tpu.memory_space<vmem>>, vector<8x512xf32>
    %48 = arith.mulf %46, %47 : vector<8x512xf32>
    %c0_28 = arith.constant 0 : index
    %c0_29 = arith.constant 0 : index
    %49 = vector.load %arg7[%c0_28, %c0_29] : memref<72x512xf32, #tpu.memory_space<vmem>>, vector<8x512xf32>
    tpu.vector_store %arg7[%c0_28, %c0_29], %48 {strides = array<i32>} : memref<72x512xf32, #tpu.memory_space<vmem>>, vector<8x512xf32>,
    %c16_i32 = arith.constant 16 : i32
    %50 = tpu.dynamic_rotate %45 by %c16_i32 dim 1 : vector<8x512xf32>, i32 -> vector<8x512xf32>
    %c8_30 = arith.constant 8 : index
    %c0_31 = arith.constant 0 : index
    %51 = vector.load %arg6[%c8_30, %c0_31] : memref<64x512xf32, #tpu.memory_space<vmem>>, vector<8x512xf32>
    %52 = arith.mulf %50, %51 : vector<8x512xf32>
    %c8_32 = arith.constant 8 : index
    %c0_33 = arith.constant 0 : index
    %53 = vector.load %arg7[%c8_32, %c0_33] : memref<72x512xf32, #tpu.memory_space<vmem>>, vector<8x512xf32>
    tpu.vector_store %arg7[%c8_32, %c0_33], %52 {strides = array<i32>} : memref<72x512xf32, #tpu.memory_space<vmem>>, vector<8x512xf32>,
    %c15_i32 = arith.constant 15 : i32
    %54 = tpu.dynamic_rotate %45 by %c15_i32 dim 1 : vector<8x512xf32>, i32 -> vector<8x512xf32>
    %c16_34 = arith.constant 16 : index
    %c0_35 = arith.constant 0 : index
    %55 = vector.load %arg6[%c16_34, %c0_35] : memref<64x512xf32, #tpu.memory_space<vmem>>, vector<8x512xf32>
    %56 = arith.mulf %54, %55 : vector<8x512xf32>
    %c16_36 = arith.constant 16 : index
    %c0_37 = arith.constant 0 : index
    %57 = vector.load %arg7[%c16_36, %c0_37] : memref<72x512xf32, #tpu.memory_space<vmem>>, vector<8x512xf32>
    tpu.vector_store %arg7[%c16_36, %c0_37], %56 {strides = array<i32>} : memref<72x512xf32, #tpu.memory_space<vmem>>, vector<8x512xf32>,
    %c1_i32 = arith.constant 1 : i32
    %58 = tpu.dynamic_rotate %45 by %c1_i32 dim 1 : vector<8x512xf32>, i32 -> vector<8x512xf32>
    %c24_38 = arith.constant 24 : index
    %c0_39 = arith.constant 0 : index
    %59 = vector.load %arg6[%c24_38, %c0_39] : memref<64x512xf32, #tpu.memory_space<vmem>>, vector<8x512xf32>
    %60 = arith.mulf %58, %59 : vector<8x512xf32>
    %c24_40 = arith.constant 24 : index
    %c0_41 = arith.constant 0 : index
    %61 = vector.load %arg7[%c24_40, %c0_41] : memref<72x512xf32, #tpu.memory_space<vmem>>, vector<8x512xf32>
    tpu.vector_store %arg7[%c24_40, %c0_41], %60 {strides = array<i32>} : memref<72x512xf32, #tpu.memory_space<vmem>>, vector<8x512xf32>,
    %c32_42 = arith.constant 32 : index
    %c0_43 = arith.constant 0 : index
    %62 = vector.load %arg7[%c32_42, %c0_43] : memref<72x512xf32, #tpu.memory_space<vmem>>, vector<8x512xf32>
    tpu.vector_store %arg7[%c32_42, %c0_43], %45 {strides = array<i32>} : memref<72x512xf32, #tpu.memory_space<vmem>>, vector<8x512xf32>,
    %c511_i32 = arith.constant 511 : i32
    %63 = tpu.dynamic_rotate %45 by %c511_i32 dim 1 : vector<8x512xf32>, i32 -> vector<8x512xf32>
    %c32_44 = arith.constant 32 : index
    %c0_45 = arith.constant 0 : index
    %64 = vector.load %arg6[%c32_44, %c0_45] : memref<64x512xf32, #tpu.memory_space<vmem>>, vector<8x512xf32>
    %65 = arith.mulf %63, %64 : vector<8x512xf32>
    %c40_46 = arith.constant 40 : index
    %c0_47 = arith.constant 0 : index
    %66 = vector.load %arg7[%c40_46, %c0_47] : memref<72x512xf32, #tpu.memory_space<vmem>>, vector<8x512xf32>
    tpu.vector_store %arg7[%c40_46, %c0_47], %65 {strides = array<i32>} : memref<72x512xf32, #tpu.memory_space<vmem>>, vector<8x512xf32>,
    %c497_i32 = arith.constant 497 : i32
    %67 = tpu.dynamic_rotate %45 by %c497_i32 dim 1 : vector<8x512xf32>, i32 -> vector<8x512xf32>
    %c40_48 = arith.constant 40 : index
    %c0_49 = arith.constant 0 : index
    %68 = vector.load %arg6[%c40_48, %c0_49] : memref<64x512xf32, #tpu.memory_space<vmem>>, vector<8x512xf32>
    %69 = arith.mulf %67, %68 : vector<8x512xf32>
    %c48_50 = arith.constant 48 : index
    %c0_51 = arith.constant 0 : index
    %70 = vector.load %arg7[%c48_50, %c0_51] : memref<72x512xf32, #tpu.memory_space<vmem>>, vector<8x512xf32>
    tpu.vector_store %arg7[%c48_50, %c0_51], %69 {strides = array<i32>} : memref<72x512xf32, #tpu.memory_space<vmem>>, vector<8x512xf32>,
    %c496_i32 = arith.constant 496 : i32
    %71 = tpu.dynamic_rotate %45 by %c496_i32 dim 1 : vector<8x512xf32>, i32 -> vector<8x512xf32>
    %c48_52 = arith.constant 48 : index
    %c0_53 = arith.constant 0 : index
    %72 = vector.load %arg6[%c48_52, %c0_53] : memref<64x512xf32, #tpu.memory_space<vmem>>, vector<8x512xf32>
    %73 = arith.mulf %71, %72 : vector<8x512xf32>
    %c56_54 = arith.constant 56 : index
    %c0_55 = arith.constant 0 : index
    %74 = vector.load %arg7[%c56_54, %c0_55] : memref<72x512xf32, #tpu.memory_space<vmem>>, vector<8x512xf32>
    tpu.vector_store %arg7[%c56_54, %c0_55], %73 {strides = array<i32>} : memref<72x512xf32, #tpu.memory_space<vmem>>, vector<8x512xf32>,
    %c495_i32 = arith.constant 495 : i32
    %75 = tpu.dynamic_rotate %45 by %c495_i32 dim 1 : vector<8x512xf32>, i32 -> vector<8x512xf32>
    %c56_56 = arith.constant 56 : index
    %c0_57 = arith.constant 0 : index
    %76 = vector.load %arg6[%c56_56, %c0_57] : memref<64x512xf32, #tpu.memory_space<vmem>>, vector<8x512xf32>
    %77 = arith.mulf %75, %76 : vector<8x512xf32>
    %c64 = arith.constant 64 : index
    %c0_58 = arith.constant 0 : index
    %78 = vector.load %arg7[%c64, %c0_58] : memref<72x512xf32, #tpu.memory_space<vmem>>, vector<8x512xf32>
    tpu.vector_store %arg7[%c64, %c0_58], %77 {strides = array<i32>} : memref<72x512xf32, #tpu.memory_space<vmem>>, vector<8x512xf32>,
    %c16_59 = arith.constant 16 : index
    %c0_60 = arith.constant 0 : index
    %79 = vector.load %arg3[%c16_59, %c0_60] : memref<72x72xf32, #tpu.memory_space<vmem>>, vector<8x72xf32>
    %c0_61 = arith.constant 0 : index
    %c0_62 = arith.constant 0 : index
    %80 = vector.load %arg7[%c0_61, %c0_62] : memref<72x512xf32, #tpu.memory_space<vmem>>, vector<72x512xf32>
    %cst_63 = arith.constant dense<0.000000e+00> : vector<8x512xf32>
    %81 = tpu.matmul %79, %80, %cst_63 {dimension_numbers = #tpu.dot_dimension_numbers<[1], [0], [0], [1], [0, 0, 1, 1], [], []>} : vector<8x72xf32>, vector<72x512xf32>, vector<8x512xf32> -> vector<8x512xf32>
    %c24_64 = arith.constant 24 : index
    %c0_65 = arith.constant 0 : index
    %82 = vector.load %arg3[%c24_64, %c0_65] : memref<72x72xf32, #tpu.memory_space<vmem>>, vector<16x8xf32>
    %cst_66 = arith.constant dense<0.000000e+00> : vector<16x512xf32>
    %83 = tpu.matmul %82, %81, %cst_66 {dimension_numbers = #tpu.dot_dimension_numbers<[1], [0], [0], [1], [0, 0, 1, 1], [], []>} : vector<16x8xf32>, vector<8x512xf32>, vector<16x512xf32> -> vector<16x512xf32>
    %c16_67 = arith.constant 16 : index
    %c0_68 = arith.constant 0 : index
    %84 = vector.load %arg4[%c16_67, %c0_68] : memref<64x1xf32, #tpu.memory_space<vmem>>, vector<16x1xf32>
    %85 = vector.broadcast %84 : vector<16x1xf32> to vector<16x512xf32>
    %86 = arith.addf %83, %85 : vector<16x512xf32>
    %87 = vector.extract_strided_slice %86 {offsets = [0, 0], sizes = [8, 512], strides = [1, 1]} : vector<16x512xf32> to vector<8x512xf32>
    %88 = vector.extract_strided_slice %86 {offsets = [8, 0], sizes = [8, 512], strides = [1, 1]} : vector<16x512xf32> to vector<8x512xf32>
    %c17_i32_69 = arith.constant 17 : i32
    %89 = tpu.dynamic_rotate %87 by %c17_i32_69 dim 1 : vector<8x512xf32>, i32 -> vector<8x512xf32>
    %c0_70 = arith.constant 0 : index
    %c0_71 = arith.constant 0 : index
    %90 = vector.load %arg6[%c0_70, %c0_71] : memref<64x512xf32, #tpu.memory_space<vmem>>, vector<8x512xf32>
    %91 = arith.mulf %89, %90 : vector<8x512xf32>
    %c0_72 = arith.constant 0 : index
    %c0_73 = arith.constant 0 : index
    %92 = vector.load %arg7[%c0_72, %c0_73] : memref<72x512xf32, #tpu.memory_space<vmem>>, vector<8x512xf32>
    tpu.vector_store %arg7[%c0_72, %c0_73], %91 {strides = array<i32>} : memref<72x512xf32, #tpu.memory_space<vmem>>, vector<8x512xf32>,
    %c16_i32_74 = arith.constant 16 : i32
    %93 = tpu.dynamic_rotate %87 by %c16_i32_74 dim 1 : vector<8x512xf32>, i32 -> vector<8x512xf32>
    %c8_75 = arith.constant 8 : index
    %c0_76 = arith.constant 0 : index
    %94 = vector.load %arg6[%c8_75, %c0_76] : memref<64x512xf32, #tpu.memory_space<vmem>>, vector<8x512xf32>
    %95 = arith.mulf %93, %94 : vector<8x512xf32>
    %c8_77 = arith.constant 8 : index
    %c0_78 = arith.constant 0 : index
    %96 = vector.load %arg7[%c8_77, %c0_78] : memref<72x512xf32, #tpu.memory_space<vmem>>, vector<8x512xf32>
    tpu.vector_store %arg7[%c8_77, %c0_78], %95 {strides = array<i32>} : memref<72x512xf32, #tpu.memory_space<vmem>>, vector<8x512xf32>,
    %c15_i32_79 = arith.constant 15 : i32
    %97 = tpu.dynamic_rotate %87 by %c15_i32_79 dim 1 : vector<8x512xf32>, i32 -> vector<8x512xf32>
    %c16_80 = arith.constant 16 : index
    %c0_81 = arith.constant 0 : index
    %98 = vector.load %arg6[%c16_80, %c0_81] : memref<64x512xf32, #tpu.memory_space<vmem>>, vector<8x512xf32>
    %99 = arith.mulf %97, %98 : vector<8x512xf32>
    %c16_82 = arith.constant 16 : index
    %c0_83 = arith.constant 0 : index
    %100 = vector.load %arg7[%c16_82, %c0_83] : memref<72x512xf32, #tpu.memory_space<vmem>>, vector<8x512xf32>
    tpu.vector_store %arg7[%c16_82, %c0_83], %99 {strides = array<i32>} : memref<72x512xf32, #tpu.memory_space<vmem>>, vector<8x512xf32>,
    %c1_i32_84 = arith.constant 1 : i32
    %101 = tpu.dynamic_rotate %87 by %c1_i32_84 dim 1 : vector<8x512xf32>, i32 -> vector<8x512xf32>
    %c24_85 = arith.constant 24 : index
    %c0_86 = arith.constant 0 : index
    %102 = vector.load %arg6[%c24_85, %c0_86] : memref<64x512xf32, #tpu.memory_space<vmem>>, vector<8x512xf32>
    %103 = arith.mulf %101, %102 : vector<8x512xf32>
    %c24_87 = arith.constant 24 : index
    %c0_88 = arith.constant 0 : index
    %104 = vector.load %arg7[%c24_87, %c0_88] : memref<72x512xf32, #tpu.memory_space<vmem>>, vector<8x512xf32>
    tpu.vector_store %arg7[%c24_87, %c0_88], %103 {strides = array<i32>} : memref<72x512xf32, #tpu.memory_space<vmem>>, vector<8x512xf32>,
    %c32_89 = arith.constant 32 : index
    %c0_90 = arith.constant 0 : index
    %105 = vector.load %arg7[%c32_89, %c0_90] : memref<72x512xf32, #tpu.memory_space<vmem>>, vector<8x512xf32>
    tpu.vector_store %arg7[%c32_89, %c0_90], %87 {strides = array<i32>} : memref<72x512xf32, #tpu.memory_space<vmem>>, vector<8x512xf32>,
    %c511_i32_91 = arith.constant 511 : i32
    %106 = tpu.dynamic_rotate %87 by %c511_i32_91 dim 1 : vector<8x512xf32>, i32 -> vector<8x512xf32>
    %c32_92 = arith.constant 32 : index
    %c0_93 = arith.constant 0 : index
    %107 = vector.load %arg6[%c32_92, %c0_93] : memref<64x512xf32, #tpu.memory_space<vmem>>, vector<8x512xf32>
    %108 = arith.mulf %106, %107 : vector<8x512xf32>
    %c40_94 = arith.constant 40 : index
    %c0_95 = arith.constant 0 : index
    %109 = vector.load %arg7[%c40_94, %c0_95] : memref<72x512xf32, #tpu.memory_space<vmem>>, vector<8x512xf32>
    tpu.vector_store %arg7[%c40_94, %c0_95], %108 {strides = array<i32>} : memref<72x512xf32, #tpu.memory_space<vmem>>, vector<8x512xf32>,
    %c497_i32_96 = arith.constant 497 : i32
    %110 = tpu.dynamic_rotate %87 by %c497_i32_96 dim 1 : vector<8x512xf32>, i32 -> vector<8x512xf32>
    %c40_97 = arith.constant 40 : index
    %c0_98 = arith.constant 0 : index
    %111 = vector.load %arg6[%c40_97, %c0_98] : memref<64x512xf32, #tpu.memory_space<vmem>>, vector<8x512xf32>
    %112 = arith.mulf %110, %111 : vector<8x512xf32>
    %c48_99 = arith.constant 48 : index
    %c0_100 = arith.constant 0 : index
    %113 = vector.load %arg7[%c48_99, %c0_100] : memref<72x512xf32, #tpu.memory_space<vmem>>, vector<8x512xf32>
    tpu.vector_store %arg7[%c48_99, %c0_100], %112 {strides = array<i32>} : memref<72x512xf32, #tpu.memory_space<vmem>>, vector<8x512xf32>,
    %c496_i32_101 = arith.constant 496 : i32
    %114 = tpu.dynamic_rotate %87 by %c496_i32_101 dim 1 : vector<8x512xf32>, i32 -> vector<8x512xf32>
    %c48_102 = arith.constant 48 : index
    %c0_103 = arith.constant 0 : index
    %115 = vector.load %arg6[%c48_102, %c0_103] : memref<64x512xf32, #tpu.memory_space<vmem>>, vector<8x512xf32>
    %116 = arith.mulf %114, %115 : vector<8x512xf32>
    %c56_104 = arith.constant 56 : index
    %c0_105 = arith.constant 0 : index
    %117 = vector.load %arg7[%c56_104, %c0_105] : memref<72x512xf32, #tpu.memory_space<vmem>>, vector<8x512xf32>
    tpu.vector_store %arg7[%c56_104, %c0_105], %116 {strides = array<i32>} : memref<72x512xf32, #tpu.memory_space<vmem>>, vector<8x512xf32>,
    %c495_i32_106 = arith.constant 495 : i32
    %118 = tpu.dynamic_rotate %87 by %c495_i32_106 dim 1 : vector<8x512xf32>, i32 -> vector<8x512xf32>
    %c56_107 = arith.constant 56 : index
    %c0_108 = arith.constant 0 : index
    %119 = vector.load %arg6[%c56_107, %c0_108] : memref<64x512xf32, #tpu.memory_space<vmem>>, vector<8x512xf32>
    %120 = arith.mulf %118, %119 : vector<8x512xf32>
    %c64_109 = arith.constant 64 : index
    %c0_110 = arith.constant 0 : index
    %121 = vector.load %arg7[%c64_109, %c0_110] : memref<72x512xf32, #tpu.memory_space<vmem>>, vector<8x512xf32>
    tpu.vector_store %arg7[%c64_109, %c0_110], %120 {strides = array<i32>} : memref<72x512xf32, #tpu.memory_space<vmem>>, vector<8x512xf32>,
    %c40_111 = arith.constant 40 : index
    %c0_112 = arith.constant 0 : index
    %122 = vector.load %arg3[%c40_111, %c0_112] : memref<72x72xf32, #tpu.memory_space<vmem>>, vector<8x72xf32>
    %c0_113 = arith.constant 0 : index
    %c0_114 = arith.constant 0 : index
    %123 = vector.load %arg7[%c0_113, %c0_114] : memref<72x512xf32, #tpu.memory_space<vmem>>, vector<72x512xf32>
    %cst_115 = arith.constant dense<0.000000e+00> : vector<8x512xf32>
    %124 = tpu.matmul %122, %123, %cst_115 {dimension_numbers = #tpu.dot_dimension_numbers<[1], [0], [0], [1], [0, 0, 1, 1], [], []>} : vector<8x72xf32>, vector<72x512xf32>, vector<8x512xf32> -> vector<8x512xf32>
    %c32_116 = arith.constant 32 : index
    %c0_117 = arith.constant 0 : index
    %125 = vector.load %arg4[%c32_116, %c0_117] : memref<64x1xf32, #tpu.memory_space<vmem>>, vector<8x1xf32>
    %126 = vector.broadcast %125 : vector<8x1xf32> to vector<8x512xf32>
    %127 = arith.addf %124, %126 : vector<8x512xf32>
    %128 = arith.mulf %127, %127 : vector<8x512xf32>
    %129 = arith.mulf %127, %128 : vector<8x512xf32>
    %cst_118 = arith.constant 4.471500e-02 : f32
    %130 = vector.broadcast %cst_118 : f32 to vector<8x512xf32>
    %131 = arith.mulf %130, %129 : vector<8x512xf32>
    %132 = arith.addf %127, %131 : vector<8x512xf32>
    %cst_119 = arith.constant 0.797884583 : f32
    %133 = vector.broadcast %cst_119 : f32 to vector<8x512xf32>
    %134 = arith.mulf %133, %132 : vector<8x512xf32>
    %135 = math.tanh %134 : vector<8x512xf32>
    %cst_120 = arith.constant 1.000000e+00 : f32
    %136 = vector.broadcast %cst_120 : f32 to vector<8x512xf32>
    %137 = arith.addf %136, %135 : vector<8x512xf32>
    %cst_121 = arith.constant 5.000000e-01 : f32
    %138 = vector.broadcast %cst_121 : f32 to vector<8x512xf32>
    %139 = arith.mulf %138, %137 : vector<8x512xf32>
    %140 = arith.mulf %127, %139 : vector<8x512xf32>
    %141 = arith.mulf %140, %88 : vector<8x512xf32>
    %c48_122 = arith.constant 48 : index
    %c0_123 = arith.constant 0 : index
    %142 = vector.load %arg3[%c48_122, %c0_123] : memref<72x72xf32, #tpu.memory_space<vmem>>, vector<8x8xf32>
    %cst_124 = arith.constant dense<0.000000e+00> : vector<8x512xf32>
    %143 = tpu.matmul %142, %141, %cst_124 {dimension_numbers = #tpu.dot_dimension_numbers<[1], [0], [0], [1], [0, 0, 1, 1], [], []>} : vector<8x8xf32>, vector<8x512xf32>, vector<8x512xf32> -> vector<8x512xf32>
    %c40_125 = arith.constant 40 : index
    %c0_126 = arith.constant 0 : index
    %144 = vector.load %arg4[%c40_125, %c0_126] : memref<64x1xf32, #tpu.memory_space<vmem>>, vector<8x1xf32>
    %145 = vector.broadcast %144 : vector<8x1xf32> to vector<8x512xf32>
    %146 = arith.addf %143, %145 : vector<8x512xf32>
    %147 = arith.addf %81, %146 : vector<8x512xf32>
    %148 = arith.addf %45, %147 : vector<8x512xf32>
    %c0_127 = arith.constant 0 : index
    %c0_128 = arith.constant 0 : index
    %149 = vector.load %arg8[%c0_127, %c0_128] : memref<24x512xf32, #tpu.memory_space<vmem>>, vector<16x512xf32>
    tpu.vector_store %arg8[%c0_127, %c0_128], %44 {strides = array<i32>} : memref<24x512xf32, #tpu.memory_space<vmem>>, vector<16x512xf32>,
    %c16_129 = arith.constant 16 : index
    %c0_130 = arith.constant 0 : index
    %150 = vector.load %arg8[%c16_129, %c0_130] : memref<24x512xf32, #tpu.memory_space<vmem>>, vector<8x512xf32>
    tpu.vector_store %arg8[%c16_129, %c0_130], %148 {strides = array<i32>} : memref<24x512xf32, #tpu.memory_space<vmem>>, vector<8x512xf32>,
    %c56_131 = arith.constant 56 : index
    %c0_132 = arith.constant 0 : index
    %151 = vector.load %arg3[%c56_131, %c0_132] : memref<72x72xf32, #tpu.memory_space<vmem>>, vector<16x24xf32>
    %c0_133 = arith.constant 0 : index
    %c0_134 = arith.constant 0 : index
    %152 = vector.load %arg8[%c0_133, %c0_134] : memref<24x512xf32, #tpu.memory_space<vmem>>, vector<24x512xf32>
    %cst_135 = arith.constant dense<0.000000e+00> : vector<16x512xf32>
    %153 = tpu.matmul %151, %152, %cst_135 {dimension_numbers = #tpu.dot_dimension_numbers<[1], [0], [0], [1], [0, 0, 1, 1], [], []>} : vector<16x24xf32>, vector<24x512xf32>, vector<16x512xf32> -> vector<16x512xf32>
    %c48_136 = arith.constant 48 : index
    %c0_137 = arith.constant 0 : index
    %154 = vector.load %arg4[%c48_136, %c0_137] : memref<64x1xf32, #tpu.memory_space<vmem>>, vector<16x1xf32>
    %155 = vector.broadcast %154 : vector<16x1xf32> to vector<16x512xf32>
    %156 = arith.addf %153, %155 : vector<16x512xf32>
    %157 = arith.negf %156 : vector<16x512xf32>
    %158 = math.exp %157 : vector<16x512xf32>
    %cst_138 = arith.constant 1.000000e+00 : f32
    %159 = vector.broadcast %cst_138 : f32 to vector<16x512xf32>
    %160 = arith.addf %159, %158 : vector<16x512xf32>
    %161 = arith.divf %159, %160 : vector<16x512xf32>
    %162 = arith.mulf %156, %161 : vector<16x512xf32>
    %c0_139 = arith.constant 0 : index
    %c0_140 = arith.constant 0 : index
    %c0_141 = arith.constant 0 : index
    %163 = vector.load %arg5[%c0_139, %c0_140, %c0_141] : memref<1x16x512xf32, #tpu.memory_space<vmem>>, vector<1x16x512xf32>
    %164 = vector.shape_cast %163 : vector<1x16x512xf32> to vector<16x512xf32>
    %165 = vector.shape_cast %162 : vector<16x512xf32> to vector<1x16x512xf32>
    tpu.vector_store %arg5[%c0_139, %c0_140, %c0_141], %165 {strides = array<i32>} : memref<1x16x512xf32, #tpu.memory_space<vmem>>, vector<1x16x512xf32>,
    return
  }
  func.func @transform_0(%arg0: i32) -> (i32, i32, i32) {
    %c0_i32 = arith.constant 0 : i32
    %c0_i32_0 = arith.constant 0 : i32
    %c0_i32_1 = arith.constant 0 : i32
    return %arg0, %c0_i32, %c0_i32_0 : i32, i32, i32
  }
  func.func @transform_1(%arg0: i32) -> (i32, i32) {
    %c0_i32 = arith.constant 0 : i32
    %c0_i32_0 = arith.constant 0 : i32
    %c0_i32_1 = arith.constant 0 : i32
    return %c0_i32, %c0_i32_0 : i32, i32
  }
  func.func @transform_2(%arg0: i32) -> (i32, i32) {
    %c0_i32 = arith.constant 0 : i32
    %c0_i32_0 = arith.constant 0 : i32
    %c0_i32_1 = arith.constant 0 : i32
    return %c0_i32, %c0_i32_0 : i32, i32
  }
  func.func @transform_3(%arg0: i32) -> (i32, i32) {
    %c0_i32 = arith.constant 0 : i32
    %c0_i32_0 = arith.constant 0 : i32
    %c0_i32_1 = arith.constant 0 : i32
    return %c0_i32, %c0_i32_0 : i32, i32
  }
  func.func @transform_4(%arg0: i32) -> (i32, i32, i32) {
    %c0_i32 = arith.constant 0 : i32
    %c0_i32_0 = arith.constant 0 : i32
    %c0_i32_1 = arith.constant 0 : i32
    return %arg0, %c0_i32, %c0_i32_0 : i32, i32, i32
  }
}

</mosaic_0001>

<llo_original>
// kernel: tpu_custom_call.1
$region0: #{tpu_custom_call.1}
  #allocation0 [shape = 'u32[]', space=smem, size = 0x4, offset = 0x4, fixed_abs, tag = 'smem constant byte address 0x4 - core index']
  #allocation1 [shape = 'u32[144,128]{1,0:T(1,128)}', space=vmem, size = 0x12000, scoped, tag = 'internal scratch']
  #allocation2 [shape = 'f32[64,512]{1,0:T(8,128)}', space=vmem, size = 0x20000, scoped, tag = 'scratch operand']
  #allocation3 [shape = 'f32[72,512]{1,0:T(8,128)}', space=vmem, size = 0x24000, scoped, tag = 'scratch operand']
  #allocation4 [shape = 'f32[24,512]{1,0:T(8,128)}', space=vmem, size = 0xc000, scoped, tag = 'scratch operand']
  %s0 = inlined_call_operand.hbm [shape: f32[1,16,512], index: 0, kind: input, shape index: {}]
  %s1 = inlined_call_operand.hbm [shape: f32[9,512], index: 1, kind: input, shape index: {}]
  %s2 = inlined_call_operand.vmem [shape: f32[72,72], index: 2, kind: input, shape index: {}]
  %s3 = inlined_call_operand.vmem [shape: f32[64,1], index: 3, kind: input, shape index: {}]
  %s4 = inlined_call_operand.hbm [shape: f32[1,16,512], index: 4, kind: output, shape index: {}]
  %s5 = sld [smem:[#allocation0]]
  $region34: #{tpu_custom_call.1} parent=0
    _
  %s7 = ssub.s32 1, %s5
  %s8 = scalar_select 0, %s7, %s5
  $region1: #{tpu_custom_call.1} parent=0
    #allocation5 [shape = 'u8[32768]{0}', space=vmem, size = 0x8000, scoped, tag = 'input window, operand 0, single buffered']
    #allocation6 [shape = 's32[1]{0}', space=sflag, size = 0x4, scoped, tag = 'scoped memory for tpu_custom_call.1']
    #allocation7 [shape = 's32[1]{0}', space=sflag, size = 0x4, scoped, tag = 'scoped memory for tpu_custom_call.1']
    #allocation8 [shape = 'u8[32768]{0}', space=vmem, size = 0x8000, scoped, tag = 'input window, operand 1, single buffered']
    #allocation9 [shape = 's32[1]{0}', space=sflag, size = 0x4, scoped, tag = 'scoped memory for tpu_custom_call.1']
    #allocation10 [shape = 'u8[32768]{0}', space=vmem, size = 0x8000, scoped, tag = 'output window, operand 0, single buffered']
    %9 = vsyncpa [#allocation6], 0
    %10 = vsyncpa [#allocation9], 0
    %11 = vsyncpa [#allocation7], 0
    // Predicated region
    $region2: #{tpu_custom_call.1} parent=1 // pred_check
      _
    $region3: #{tpu_custom_call.1} parent=1 // pred_check_branch
      %13 = sbr.rel (0) target = $region5
    $region4: #{tpu_custom_call.1} parent=1 // pred_region
      %s15 = ssub.s32 1024, 1024
      %16 = vsyncadd [#allocation6], %s15
      %s17 = sshll.u32 [#allocation5], 4
      %s18 = int_to_ptr.vmem [resolvable:$true] %s17
      %23 = dma.hbm_to_vmem [thread:$0]  %s0, 1024, %s18, [#allocation6], 512, 512, 32
    $region5: #{tpu_custom_call.1} parent=1 // pred_fallthru
      _
    // Predicated region
    $region6: #{tpu_custom_call.1} parent=1 // pred_check
      _
    $region7: #{tpu_custom_call.1} parent=1 // pred_check_branch
      %25 = sbr.rel (0) target = $region9
    $region8: #{tpu_custom_call.1} parent=1 // pred_region
      %s27 = ssub.s32 1024, 1024
      %28 = vsyncadd [#allocation9], %s27
      %s29 = sshll.u32 [#allocation8], 4
      %s30 = int_to_ptr.vmem [resolvable:$true] %s29
      %35 = dma.hbm_to_vmem [thread:$0]  %s1, 1024, %s30, [#allocation9], 512, 512, 32
    $region9: #{tpu_custom_call.1} parent=1 // pred_fallthru
      _
    // Predicated region
    $region10: #{tpu_custom_call.1} parent=1 // pred_check
      _
    $region11: #{tpu_custom_call.1} parent=1 // pred_check_branch
      %37 = sbr.rel (0) target = $region13
    $region12: #{tpu_custom_call.1} parent=1 // pred_region
      _
    $region13: #{tpu_custom_call.1} parent=1 // pred_fallthru
      _
    // Predicated region
    $region14: #{tpu_custom_call.1} parent=1 // pred_check
      _
    $region15: #{tpu_custom_call.1} parent=1 // pred_check_branch
      %39 = sbr.rel (0) target = $region17
    $region16: #{tpu_custom_call.1} parent=1 // pred_region
      _
    $region17: #{tpu_custom_call.1} parent=1 // pred_fallthru
      _
    // Predicated region
    $region18: #{tpu_custom_call.1} parent=1 // pred_check
      _
    $region19: #{tpu_custom_call.1} parent=1 // pred_check_branch
      %41 = sbr.rel (0) target = $region21
    $region20: #{tpu_custom_call.1} parent=1 // pred_region
      %42 = dma.done [#allocation6], 1024
    $region21: #{tpu_custom_call.1} parent=1 // pred_fallthru
      _
    // Predicated region
    $region22: #{tpu_custom_call.1} parent=1 // pred_check
      _
    $region23: #{tpu_custom_call.1} parent=1 // pred_check_branch
      %44 = sbr.rel (0) target = $region25
    $region24: #{tpu_custom_call.1} parent=1 // pred_region
      %45 = dma.done [#allocation9], 1024
    $region25: #{tpu_custom_call.1} parent=1 // pred_fallthru
      _
    %v46 = vld [vmem:[#allocation5] sm:$0xff]
    %v47 = vld [vmem:[#allocation5 + $0x8] sm:$0xff]
    %v48 = vld [vmem:[#allocation5 + $0x10] sm:$0xff]
    %v49 = vld [vmem:[#allocation5 + $0x18] sm:$0xff]
    %v50 = vld [vmem:[#allocation5 + $0x20] sm:$0xff]
    %v51 = vld [vmem:[#allocation5 + $0x28] sm:$0xff]
    %v52 = vld [vmem:[#allocation5 + $0x30] sm:$0xff]
    %v53 = vld [vmem:[#allocation5 + $0x38] sm:$0xff]
    %v54 = vld [vmem:[#allocation8] ss:$8 sm:$0xf]
    %v56 = vlaneseq
    %v57 = vshrl.u32 %v56, 7
    %v58 = vsub.s32 0, %v57
    %v59 = vrot.slane %v54, %v58
    %v60 = vlaneseq
    %v61 = vshrl.u32 %v60, 7
    %v62 = vsub.s32 1, %v61
    %v63 = vrot.slane %v54, %v62
    %v64 = vlaneseq
    %v65 = vshrl.u32 %v64, 7
    %v66 = vsub.s32 2, %v65
    %v67 = vrot.slane %v54, %v66
    %v68 = vlaneseq
    %v69 = vshrl.u32 %v68, 7
    %v70 = vsub.s32 3, %v69
    %v71 = vrot.slane %v54, %v70
    %76 = vst [vmem:[#allocation2] sm:$0xff] %v59
    %77 = vst [vmem:[#allocation2 + $0x8] sm:$0xff] %v63
    %78 = vst [vmem:[#allocation2 + $0x10] sm:$0xff] %v67
    %79 = vst [vmem:[#allocation2 + $0x18] sm:$0xff] %v71
    %s80 = scalar_lea.vmem [#allocation8], 1
    %v81 = vld [vmem:[%s80] ss:$8 sm:$0xf]
    %v83 = vlaneseq
    %v84 = vshrl.u32 %v83, 7
    %v85 = vsub.s32 0, %v84
    %v86 = vrot.slane %v81, %v85
    %v87 = vlaneseq
    %v88 = vshrl.u32 %v87, 7
    %v89 = vsub.s32 1, %v88
    %v90 = vrot.slane %v81, %v89
    %v91 = vlaneseq
    %v92 = vshrl.u32 %v91, 7
    %v93 = vsub.s32 2, %v92
    %v94 = vrot.slane %v81, %v93
    %v95 = vlaneseq
    %v96 = vshrl.u32 %v95, 7
    %v97 = vsub.s32 3, %v96
    %v98 = vrot.slane %v81, %v97
    %103 = vst [vmem:[#allocation2 + $0x20] sm:$0xff] %v86
    %104 = vst [vmem:[#allocation2 + $0x28] sm:$0xff] %v90
    %105 = vst [vmem:[#allocation2 + $0x30] sm:$0xff] %v94
    %106 = vst [vmem:[#allocation2 + $0x38] sm:$0xff] %v98
    %s107 = scalar_lea.vmem [#allocation8], 2
    %v108 = vld [vmem:[%s107] ss:$8 sm:$0xf]
    %v110 = vlaneseq
    %v111 = vshrl.u32 %v110, 7
    %v112 = vsub.s32 0, %v111
    %v113 = vrot.slane %v108, %v112
    %v114 = vlaneseq
    %v115 = vshrl.u32 %v114, 7
    %v116 = vsub.s32 1, %v115
    %v117 = vrot.slane %v108, %v116
    %v118 = vlaneseq
    %v119 = vshrl.u32 %v118, 7
    %v120 = vsub.s32 2, %v119
    %v121 = vrot.slane %v108, %v120
    %v122 = vlaneseq
    %v123 = vshrl.u32 %v122, 7
    %v124 = vsub.s32 3, %v123
    %v125 = vrot.slane %v108, %v124
    %130 = vst [vmem:[#allocation2 + $0x40] sm:$0xff] %v113
    %131 = vst [vmem:[#allocation2 + $0x48] sm:$0xff] %v117
    %132 = vst [vmem:[#allocation2 + $0x50] sm:$0xff] %v121
    %133 = vst [vmem:[#allocation2 + $0x58] sm:$0xff] %v125
    %s134 = scalar_lea.vmem [#allocation8], 3
    %v135 = vld [vmem:[%s134] ss:$8 sm:$0xf]
    %v137 = vlaneseq
    %v138 = vshrl.u32 %v137, 7
    %v139 = vsub.s32 0, %v138
    %v140 = vrot.slane %v135, %v139
    %v141 = vlaneseq
    %v142 = vshrl.u32 %v141, 7
    %v143 = vsub.s32 1, %v142
    %v144 = vrot.slane %v135, %v143
    %v145 = vlaneseq
    %v146 = vshrl.u32 %v145, 7
    %v147 = vsub.s32 2, %v146
    %v148 = vrot.slane %v135, %v147
    %v149 = vlaneseq
    %v150 = vshrl.u32 %v149, 7
    %v151 = vsub.s32 3, %v150
    %v152 = vrot.slane %v135, %v151
    %157 = vst [vmem:[#allocation2 + $0x60] sm:$0xff] %v140
    %158 = vst [vmem:[#allocation2 + $0x68] sm:$0xff] %v144
    %159 = vst [vmem:[#allocation2 + $0x70] sm:$0xff] %v148
    %160 = vst [vmem:[#allocation2 + $0x78] sm:$0xff] %v152
    %s161 = scalar_lea.vmem [#allocation8], 5
    %v162 = vld [vmem:[%s161] ss:$8 sm:$0xf]
    %v164 = vlaneseq
    %v165 = vshrl.u32 %v164, 7
    %v166 = vsub.s32 0, %v165
    %v167 = vrot.slane %v162, %v166
    %v168 = vlaneseq
    %v169 = vshrl.u32 %v168, 7
    %v170 = vsub.s32 1, %v169
    %v171 = vrot.slane %v162, %v170
    %v172 = vlaneseq
    %v173 = vshrl.u32 %v172, 7
    %v174 = vsub.s32 2, %v173
    %v175 = vrot.slane %v162, %v174
    %v176 = vlaneseq
    %v177 = vshrl.u32 %v176, 7
    %v178 = vsub.s32 3, %v177
    %v179 = vrot.slane %v162, %v178
    %184 = vst [vmem:[#allocation2 + $0x80] sm:$0xff] %v167
    %185 = vst [vmem:[#allocation2 + $0x88] sm:$0xff] %v171
    %186 = vst [vmem:[#allocation2 + $0x90] sm:$0xff] %v175
    %187 = vst [vmem:[#allocation2 + $0x98] sm:$0xff] %v179
    %s188 = scalar_lea.vmem [#allocation8], 6
    %v189 = vld [vmem:[%s188] ss:$8 sm:$0xf]
    %v191 = vlaneseq
    %v192 = vshrl.u32 %v191, 7
    %v193 = vsub.s32 0, %v192
    %v194 = vrot.slane %v189, %v193
    %v195 = vlaneseq
    %v196 = vshrl.u32 %v195, 7
    %v197 = vsub.s32 1, %v196
    %v198 = vrot.slane %v189, %v197
    %v199 = vlaneseq
    %v200 = vshrl.u32 %v199, 7
    %v201 = vsub.s32 2, %v200
    %v202 = vrot.slane %v189, %v201
    %v203 = vlaneseq
    %v204 = vshrl.u32 %v203, 7
    %v205 = vsub.s32 3, %v204
    %v206 = vrot.slane %v189, %v205
    %211 = vst [vmem:[#allocation2 + $0xa0] sm:$0xff] %v194
    %212 = vst [vmem:[#allocation2 + $0xa8] sm:$0xff] %v198
    %213 = vst [vmem:[#allocation2 + $0xb0] sm:$0xff] %v202
    %214 = vst [vmem:[#allocation2 + $0xb8] sm:$0xff] %v206
    %s215 = scalar_lea.vmem [#allocation8], 7
    %v216 = vld [vmem:[%s215] ss:$8 sm:$0xf]
    %v218 = vlaneseq
    %v219 = vshrl.u32 %v218, 7
    %v220 = vsub.s32 0, %v219
    %v221 = vrot.slane %v216, %v220
    %v222 = vlaneseq
    %v223 = vshrl.u32 %v222, 7
    %v224 = vsub.s32 1, %v223
    %v225 = vrot.slane %v216, %v224
    %v226 = vlaneseq
    %v227 = vshrl.u32 %v226, 7
    %v228 = vsub.s32 2, %v227
    %v229 = vrot.slane %v216, %v228
    %v230 = vlaneseq
    %v231 = vshrl.u32 %v230, 7
    %v232 = vsub.s32 3, %v231
    %v233 = vrot.slane %v216, %v232
    %238 = vst [vmem:[#allocation2 + $0xc0] sm:$0xff] %v221
    %239 = vst [vmem:[#allocation2 + $0xc8] sm:$0xff] %v225
    %240 = vst [vmem:[#allocation2 + $0xd0] sm:$0xff] %v229
    %241 = vst [vmem:[#allocation2 + $0xd8] sm:$0xff] %v233
    %s242 = scalar_lea.vmem [#allocation8], 32
    %v243 = vld [vmem:[%s242] ss:$8 sm:$0xf]
    %v245 = vlaneseq
    %v246 = vshrl.u32 %v245, 7
    %v247 = vsub.s32 0, %v246
    %v248 = vrot.slane %v243, %v247
    %v249 = vlaneseq
    %v250 = vshrl.u32 %v249, 7
    %v251 = vsub.s32 1, %v250
    %v252 = vrot.slane %v243, %v251
    %v253 = vlaneseq
    %v254 = vshrl.u32 %v253, 7
    %v255 = vsub.s32 2, %v254
    %v256 = vrot.slane %v243, %v255
    %v257 = vlaneseq
    %v258 = vshrl.u32 %v257, 7
    %v259 = vsub.s32 3, %v258
    %v260 = vrot.slane %v243, %v259
    %265 = vst [vmem:[#allocation2 + $0xe0] sm:$0xff] %v248
    %266 = vst [vmem:[#allocation2 + $0xe8] sm:$0xff] %v252
    %267 = vst [vmem:[#allocation2 + $0xf0] sm:$0xff] %v256
    %268 = vst [vmem:[#allocation2 + $0xf8] sm:$0xff] %v260
    %v269 = vld [vmem:[%s2] sm:$0xff]
    %v270 = vld [vmem:[%s2 + $0x8] sm:$0xff]
    %v271 = vld [vmem:[%s3] sm:$0xff]
    %v272 = vld [vmem:[%s3 + $0x8] sm:$0xff]
    %274 = vset.pattern.permute.xlu0 0
    %275 = vperm.xlu0 %274, %v271
    %v276 = vpop.permute.xlu0 %275
    %279 = vset.pattern.permute.xlu0 0
    %280 = vperm.xlu0 %279, %v272
    %v281 = vpop.permute.xlu0 %280
    %vm283 = vcmask 130048
    %v285 = vsel %vm283, %v269, 0
    %v288 = vsel %vm283, %v270, 0
    %290 = vmatprep.subr.mxu0 %v47
    %291 = vmatpush1.msra.mxu0 %v46
    %292 = vmatprep.subr.mxu0 %v51
    %293 = vmatpush1.msra.mxu0 %v50
    %294 = vmatprep.subr.mxu0 0.0
    %295 = vmatpush1.msra.mxu0 0.0
    %296 = vmatprep.subr.mxu0 0.0
    %297 = vmatpush1.msra.mxu0 0.0
    %298 = vmatprep.subr.mxu0 0.0
    %299 = vmatpush1.msra.mxu0 0.0
    %300 = vmatprep.subr.mxu0 0.0
    %301 = vmatpush1.msra.mxu0 0.0
    %302 = vmatprep.subr.mxu0 0.0
    %303 = vmatpush1.msra.mxu0 0.0
    %304 = vmatprep.subr.mxu0 0.0
    %305 = vmatpush1.msra.mxu0 0.0
    %306 = vmatprep.subr.mxu0 0.0
    %307 = vmatpush1.msra.mxu0 0.0
    %308 = vmatprep.subr.mxu0 0.0
    %309 = vmatpush1.msra.mxu0 0.0
    %310 = vmatprep.subr.mxu0 0.0
    %311 = vmatpush1.msra.mxu0 0.0
    %312 = vmatprep.subr.mxu0 0.0
    %313 = vmatpush1.msra.mxu0 0.0
    %314 = vmatprep.subr.mxu0 0.0
    %315 = vmatpush1.msra.mxu0 0.0
    %316 = vmatprep.subr.mxu0 0.0
    %317 = vmatpush1.msra.mxu0 0.0
    %318 = vmatprep.subr.mxu0 0.0
    %319 = vmatpush1.msra.mxu0 0.0
    %320 = vmatprep.subr.mxu0 0.0
    %321 = vmatpush1.msra.mxu0 0.0
    %322 = vmatprep.subr.mxu0 0.0
    %323 = vmatpush1.msra.mxu0 0.0
    %324 = vmatprep.subr.mxu0 0.0
    %325 = vmatpush1.msra.mxu0 0.0
    %326 = vmatprep.subr.mxu0 0.0
    %327 = vmatpush1.msra.mxu0 0.0
    %328 = vmatprep.subr.mxu0 0.0
    %329 = vmatpush1.msra.mxu0 0.0
    %330 = vmatprep.subr.mxu0 0.0
    %331 = vmatpush1.msra.mxu0 0.0
    %332 = vmatprep.subr.mxu0 0.0
    %333 = vmatpush1.msra.mxu0 0.0
    %334 = vmatprep.subr.mxu0 0.0
    %335 = vmatpush1.msra.mxu0 0.0
    %336 = vmatprep.subr.mxu0 0.0
    %337 = vmatpush1.msra.mxu0 0.0
    %338 = vmatprep.subr.mxu0 0.0
    %339 = vmatpush1.msra.mxu0 0.0
    %340 = vmatprep.subr.mxu0 0.0
    %341 = vmatpush1.msra.mxu0 0.0
    %342 = vmatprep.subr.mxu0 0.0
    %343 = vmatpush1.msra.mxu0 0.0
    %344 = vmatprep.subr.mxu0 0.0
    %345 = vmatpush1.msra.mxu0 0.0
    %346 = vmatprep.subr.mxu0 0.0
    %347 = vmatpush1.msra.mxu0 0.0
    %348 = vmatprep.subr.mxu0 0.0
    %349 = vmatpush1.msra.mxu0 0.0
    %350 = vmatprep.subr.mxu0 0.0
    %351 = vmatpush1.msra.mxu0 0.0
    %352 = vmatprep.subr.mxu0 0.0
    %353 = vmatpush1.msra.mxu0 0.0
    %354 = vmatprep.mubr.f32.mxu0 0.0
    %355 = vmatmul.mubr.f32.gmra.mrb[0].mxu0 %v285
    %v356 = vpop.f32.mrb[0].mxu0
    %v357 = vadd.f32 %v276, %v356
    %v358 = vpop.f32.mrb[0].mxu0
    %v359 = vadd.f32 %v276, %v358
    %360 = vmatprep.mubr.f32.mxu0 0.0
    %361 = vmatmul.mubr.f32.gmra.mrb[0].mxu0 %v288
    %v362 = vpop.f32.mrb[0].mxu0
    %v363 = vadd.f32 %v281, %v362
    %v364 = vpop.f32.mrb[0].mxu0
    %v365 = vadd.f32 %v281, %v364
    %366 = vdwg.mxu0
    %367 = vmatprep.subr.mxu0 %v49
    %368 = vmatpush1.msra.mxu0 %v48
    %369 = vmatprep.subr.mxu0 %v53
    %370 = vmatpush1.msra.mxu0 %v52
    %371 = vmatprep.subr.mxu0 0.0
    %372 = vmatpush1.msra.mxu0 0.0
    %373 = vmatprep.subr.mxu0 0.0
    %374 = vmatpush1.msra.mxu0 0.0
    %375 = vmatprep.subr.mxu0 0.0
    %376 = vmatpush1.msra.mxu0 0.0
    %377 = vmatprep.subr.mxu0 0.0
    %378 = vmatpush1.msra.mxu0 0.0
    %379 = vmatprep.subr.mxu0 0.0
    %380 = vmatpush1.msra.mxu0 0.0
    %381 = vmatprep.subr.mxu0 0.0
    %382 = vmatpush1.msra.mxu0 0.0
    %383 = vmatprep.subr.mxu0 0.0
    %384 = vmatpush1.msra.mxu0 0.0
    %385 = vmatprep.subr.mxu0 0.0
    %386 = vmatpush1.msra.mxu0 0.0
    %387 = vmatprep.subr.mxu0 0.0
    %388 = vmatpush1.msra.mxu0 0.0
    %389 = vmatprep.subr.mxu0 0.0
    %390 = vmatpush1.msra.mxu0 0.0
    %391 = vmatprep.subr.mxu0 0.0
    %392 = vmatpush1.msra.mxu0 0.0
    %393 = vmatprep.subr.mxu0 0.0
    %394 = vmatpush1.msra.mxu0 0.0
    %395 = vmatprep.subr.mxu0 0.0
    %396 = vmatpush1.msra.mxu0 0.0
    %397 = vmatprep.subr.mxu0 0.0
    %398 = vmatpush1.msra.mxu0 0.0
    %399 = vmatprep.subr.mxu0 0.0
    %400 = vmatpush1.msra.mxu0 0.0
    %401 = vmatprep.subr.mxu0 0.0
    %402 = vmatpush1.msra.mxu0 0.0
    %403 = vmatprep.subr.mxu0 0.0
    %404 = vmatpush1.msra.mxu0 0.0
    %405 = vmatprep.subr.mxu0 0.0
    %406 = vmatpush1.msra.mxu0 0.0
    %407 = vmatprep.subr.mxu0 0.0
    %408 = vmatpush1.msra.mxu0 0.0
    %409 = vmatprep.subr.mxu0 0.0
    %410 = vmatpush1.msra.mxu0 0.0
    %411 = vmatprep.subr.mxu0 0.0
    %412 = vmatpush1.msra.mxu0 0.0
    %413 = vmatprep.subr.mxu0 0.0
    %414 = vmatpush1.msra.mxu0 0.0
    %415 = vmatprep.subr.mxu0 0.0
    %416 = vmatpush1.msra.mxu0 0.0
    %417 = vmatprep.subr.mxu0 0.0
    %418 = vmatpush1.msra.mxu0 0.0
    %419 = vmatprep.subr.mxu0 0.0
    %420 = vmatpush1.msra.mxu0 0.0
    %421 = vmatprep.subr.mxu0 0.0
    %422 = vmatpush1.msra.mxu0 0.0
    %423 = vmatprep.subr.mxu0 0.0
    %424 = vmatpush1.msra.mxu0 0.0
    %425 = vmatprep.subr.mxu0 0.0
    %426 = vmatpush1.msra.mxu0 0.0
    %427 = vmatprep.subr.mxu0 0.0
    %428 = vmatpush1.msra.mxu0 0.0
    %429 = vmatprep.subr.mxu0 0.0
    %430 = vmatpush1.msra.mxu0 0.0
    %431 = vmatprep.mubr.f32.mxu0 0.0
    %432 = vmatmul.mubr.f32.gmra.mrb[0].mxu0 %v285
    %v433 = vpop.f32.mrb[0].mxu0
    %v434 = vadd.f32 %v276, %v433
    %v435 = vpop.f32.mrb[0].mxu0
    %v436 = vadd.f32 %v276, %v435
    %437 = vmatprep.mubr.f32.mxu0 0.0
    %438 = vmatmul.mubr.f32.gmra.mrb[0].mxu0 %v288
    %v439 = vpop.f32.mrb[0].mxu0
    %v440 = vadd.f32 %v281, %v439
    %v441 = vpop.f32.mrb[0].mxu0
    %v442 = vadd.f32 %v281, %v441
    %443 = vdwg.mxu0
    %v444 = vxor.u32 %v357, 2147483648
    %v445 = vxor.u32 %v359, 2147483648
    %v446 = vxor.u32 %v434, 2147483648
    %v447 = vxor.u32 %v436, 2147483648
    %v448 = vxor.u32 %v363, 2147483648
    %v449 = vxor.u32 %v365, 2147483648
    %v450 = vxor.u32 %v440, 2147483648
    %v451 = vxor.u32 %v442, 2147483648
    %v452 = vmul.f32 %v444, 1.442695
    %v453 = vpow.pop %v452
    %v454 = vmul.f32 %v445, 1.442695
    %v455 = vpow.pop %v454
    %v456 = vmul.f32 %v446, 1.442695
    %v457 = vpow.pop %v456
    %v458 = vmul.f32 %v447, 1.442695
    %v459 = vpow.pop %v458
    %v460 = vmul.f32 %v448, 1.442695
    %v461 = vpow.pop %v460
    %v462 = vmul.f32 %v449, 1.442695
    %v463 = vpow.pop %v462
    %v464 = vmul.f32 %v450, 1.442695
    %v465 = vpow.pop %v464
    %v466 = vmul.f32 %v451, 1.442695
    %v467 = vpow.pop %v466
    %v468 = vadd.f32 %v453, 1.0
    %v469 = vadd.f32 %v455, 1.0
    %v470 = vadd.f32 %v457, 1.0
    %v471 = vadd.f32 %v459, 1.0
    %v472 = vadd.f32 %v461, 1.0
    %v473 = vadd.f32 %v463, 1.0
    %v474 = vadd.f32 %v465, 1.0
    %v475 = vadd.f32 %v467, 1.0
    %v476 = vrcp.pop %v468
    %v477 = vmul.f32 1.0, %v476
    %v478 = vrcp.pop %v469
    %v479 = vmul.f32 1.0, %v478
    %v480 = vrcp.pop %v470
    %v481 = vmul.f32 1.0, %v480
    %v482 = vrcp.pop %v471
    %v483 = vmul.f32 1.0, %v482
    %v484 = vrcp.pop %v472
    %v485 = vmul.f32 1.0, %v484
    %v486 = vrcp.pop %v473
    %v487 = vmul.f32 1.0, %v486
    %v488 = vrcp.pop %v474
    %v489 = vmul.f32 1.0, %v488
    %v490 = vrcp.pop %v475
    %v491 = vmul.f32 1.0, %v490
    %v492 = vmul.f32 %v357, %v477
    %v493 = vmul.f32 %v359, %v479
    %v494 = vmul.f32 %v434, %v481
    %v495 = vmul.f32 %v436, %v483
    %v496 = vmul.f32 %v363, %v485
    %v497 = vmul.f32 %v365, %v487
    %v498 = vmul.f32 %v440, %v489
    %v499 = vmul.f32 %v442, %v491
    %500 = vrot.lane.b32.xlu0 %v496, 17
    %v501 = vpop.permute.xlu0 %500
    %502 = vrot.lane.b32.xlu0 %v497, 17
    %v503 = vpop.permute.xlu0 %502
    %504 = vrot.lane.b32.xlu0 %v498, 17
    %v505 = vpop.permute.xlu0 %504
    %506 = vrot.lane.b32.xlu0 %v499, 17
    %v507 = vpop.permute.xlu0 %506
    %v508 = vlaneseq
    %v509 = vand.u32 %v508, 127
    %vm510 = vcmp.lt.s32.totalorder %v509, 17
    %v511 = vsel %vm510, %v505, %v507
    %v512 = vsel %vm510, %v503, %v505
    %v513 = vsel %vm510, %v501, %v503
    %v514 = vsel %vm510, %v507, %v501
    %v515 = vld [vmem:[#allocation2] sm:$0xff]
    %v516 = vld [vmem:[#allocation2 + $0x8] sm:$0xff]
    %v517 = vld [vmem:[#allocation2 + $0x10] sm:$0xff]
    %v518 = vld [vmem:[#allocation2 + $0x18] sm:$0xff]
    %v519 = vmul.f32 %v514, %v515
    %v520 = vmul.f32 %v513, %v516
    %v521 = vmul.f32 %v512, %v517
    %v522 = vmul.f32 %v511, %v518
    %523 = vst [vmem:[#allocation3] sm:$0xff] %v519
    %524 = vst [vmem:[#allocation3 + $0x8] sm:$0xff] %v520
    %525 = vst [vmem:[#allocation3 + $0x10] sm:$0xff] %v521
    %526 = vst [vmem:[#allocation3 + $0x18] sm:$0xff] %v522
    %527 = vrot.lane.b32.xlu0 %v496, 16
    %v528 = vpop.permute.xlu0 %527
    %529 = vrot.lane.b32.xlu0 %v497, 16
    %v530 = vpop.permute.xlu0 %529
    %531 = vrot.lane.b32.xlu0 %v498, 16
    %v532 = vpop.permute.xlu0 %531
    %533 = vrot.lane.b32.xlu0 %v499, 16
    %v534 = vpop.permute.xlu0 %533
    %vm535 = vcmp.lt.s32.totalorder %v509, 16
    %v536 = vsel %vm535, %v532, %v534
    %v537 = vsel %vm535, %v530, %v532
    %v538 = vsel %vm535, %v528, %v530
    %v539 = vsel %vm535, %v534, %v528
    %v540 = vld [vmem:[#allocation2 + $0x20] sm:$0xff]
    %v541 = vld [vmem:[#allocation2 + $0x28] sm:$0xff]
    %v542 = vld [vmem:[#allocation2 + $0x30] sm:$0xff]
    %v543 = vld [vmem:[#allocation2 + $0x38] sm:$0xff]
    %v544 = vmul.f32 %v539, %v540
    %v545 = vmul.f32 %v538, %v541
    %v546 = vmul.f32 %v537, %v542
    %v547 = vmul.f32 %v536, %v543
    %548 = vst [vmem:[#allocation3 + $0x20] sm:$0xff] %v544
    %549 = vst [vmem:[#allocation3 + $0x28] sm:$0xff] %v545
    %550 = vst [vmem:[#allocation3 + $0x30] sm:$0xff] %v546
    %551 = vst [vmem:[#allocation3 + $0x38] sm:$0xff] %v547
    %552 = vrot.lane.b32.xlu0 %v496, 15
    %v553 = vpop.permute.xlu0 %552
    %554 = vrot.lane.b32.xlu0 %v497, 15
    %v555 = vpop.permute.xlu0 %554
    %556 = vrot.lane.b32.xlu0 %v498, 15
    %v557 = vpop.permute.xlu0 %556
    %558 = vrot.lane.b32.xlu0 %v499, 15
    %v559 = vpop.permute.xlu0 %558
    %vm560 = vcmp.lt.s32.totalorder %v509, 15
    %v561 = vsel %vm560, %v557, %v559
    %v562 = vsel %vm560, %v555, %v557
    %v563 = vsel %vm560, %v553, %v555
    %v564 = vsel %vm560, %v559, %v553
    %v565 = vld [vmem:[#allocation2 + $0x40] sm:$0xff]
    %v566 = vld [vmem:[#allocation2 + $0x48] sm:$0xff]
    %v567 = vld [vmem:[#allocation2 + $0x50] sm:$0xff]
    %v568 = vld [vmem:[#allocation2 + $0x58] sm:$0xff]
    %v569 = vmul.f32 %v564, %v565
    %v570 = vmul.f32 %v563, %v566
    %v571 = vmul.f32 %v562, %v567
    %v572 = vmul.f32 %v561, %v568
    %573 = vst [vmem:[#allocation3 + $0x40] sm:$0xff] %v569
    %574 = vst [vmem:[#allocation3 + $0x48] sm:$0xff] %v570
    %575 = vst [vmem:[#allocation3 + $0x50] sm:$0xff] %v571
    %576 = vst [vmem:[#allocation3 + $0x58] sm:$0xff] %v572
    %577 = vrot.lane.b32.xlu0 %v496, 1
    %v578 = vpop.permute.xlu0 %577
    %579 = vrot.lane.b32.xlu0 %v497, 1
    %v580 = vpop.permute.xlu0 %579
    %581 = vrot.lane.b32.xlu0 %v498, 1
    %v582 = vpop.permute.xlu0 %581
    %583 = vrot.lane.b32.xlu0 %v499, 1
    %v584 = vpop.permute.xlu0 %583
    %vm585 = vcmp.lt.s32.totalorder %v509, 1
    %v586 = vsel %vm585, %v582, %v584
    %v587 = vsel %vm585, %v580, %v582
    %v588 = vsel %vm585, %v578, %v580
    %v589 = vsel %vm585, %v584, %v578
    %v590 = vld [vmem:[#allocation2 + $0x60] sm:$0xff]
    %v591 = vld [vmem:[#allocation2 + $0x68] sm:$0xff]
    %v592 = vld [vmem:[#allocation2 + $0x70] sm:$0xff]
    %v593 = vld [vmem:[#allocation2 + $0x78] sm:$0xff]
    %v594 = vmul.f32 %v589, %v590
    %v595 = vmul.f32 %v588, %v591
    %v596 = vmul.f32 %v587, %v592
    %v597 = vmul.f32 %v586, %v593
    %598 = vst [vmem:[#allocation3 + $0x60] sm:$0xff] %v594
    %599 = vst [vmem:[#allocation3 + $0x68] sm:$0xff] %v595
    %600 = vst [vmem:[#allocation3 + $0x70] sm:$0xff] %v596
    %601 = vst [vmem:[#allocation3 + $0x78] sm:$0xff] %v597
    %602 = vst [vmem:[#allocation3 + $0x80] sm:$0xff] %v496
    %603 = vst [vmem:[#allocation3 + $0x88] sm:$0xff] %v497
    %604 = vst [vmem:[#allocation3 + $0x90] sm:$0xff] %v498
    %605 = vst [vmem:[#allocation3 + $0x98] sm:$0xff] %v499
    %606 = vrot.lane.b32.xlu0 %v496, 127
    %v607 = vpop.permute.xlu0 %606
    %608 = vrot.lane.b32.xlu0 %v497, 127
    %v609 = vpop.permute.xlu0 %608
    %610 = vrot.lane.b32.xlu0 %v498, 127
    %v611 = vpop.permute.xlu0 %610
    %612 = vrot.lane.b32.xlu0 %v499, 127
    %v613 = vpop.permute.xlu0 %612
    %vm614 = vcmp.lt.s32.totalorder %v509, 127
    %v615 = vsel %vm614, %v611, %v613
    %v616 = vsel %vm614, %v609, %v611
    %v617 = vsel %vm614, %v607, %v609
    %v618 = vsel %vm614, %v613, %v607
    %v619 = vld [vmem:[#allocation2 + $0x80] sm:$0xff]
    %v620 = vld [vmem:[#allocation2 + $0x88] sm:$0xff]
    %v621 = vld [vmem:[#allocation2 + $0x90] sm:$0xff]
    %v622 = vld [vmem:[#allocation2 + $0x98] sm:$0xff]
    %v623 = vmul.f32 %v617, %v619
    %v624 = vmul.f32 %v616, %v620
    %v625 = vmul.f32 %v615, %v621
    %v626 = vmul.f32 %v618, %v622
    %627 = vst [vmem:[#allocation3 + $0xa0] sm:$0xff] %v623
    %628 = vst [vmem:[#allocation3 + $0xa8] sm:$0xff] %v624
    %629 = vst [vmem:[#allocation3 + $0xb0] sm:$0xff] %v625
    %630 = vst [vmem:[#allocation3 + $0xb8] sm:$0xff] %v626
    %631 = vrot.lane.b32.xlu0 %v496, 113
    %v632 = vpop.permute.xlu0 %631
    %633 = vrot.lane.b32.xlu0 %v497, 113
    %v634 = vpop.permute.xlu0 %633
    %635 = vrot.lane.b32.xlu0 %v498, 113
    %v636 = vpop.permute.xlu0 %635
    %637 = vrot.lane.b32.xlu0 %v499, 113
    %v638 = vpop.permute.xlu0 %637
    %vm639 = vcmp.lt.s32.totalorder %v509, 113
    %v640 = vsel %vm639, %v636, %v638
    %v641 = vsel %vm639, %v634, %v636
    %v642 = vsel %vm639, %v632, %v634
    %v643 = vsel %vm639, %v638, %v632
    %v644 = vld [vmem:[#allocation2 + $0xa0] sm:$0xff]
    %v645 = vld [vmem:[#allocation2 + $0xa8] sm:$0xff]
    %v646 = vld [vmem:[#allocation2 + $0xb0] sm:$0xff]
    %v647 = vld [vmem:[#allocation2 + $0xb8] sm:$0xff]
    %v648 = vmul.f32 %v642, %v644
    %v649 = vmul.f32 %v641, %v645
    %v650 = vmul.f32 %v640, %v646
    %v651 = vmul.f32 %v643, %v647
    %652 = vst [vmem:[#allocation3 + $0xc0] sm:$0xff] %v648
    %653 = vst [vmem:[#allocation3 + $0xc8] sm:$0xff] %v649
    %654 = vst [vmem:[#allocation3 + $0xd0] sm:$0xff] %v650
    %655 = vst [vmem:[#allocation3 + $0xd8] sm:$0xff] %v651
    %656 = vrot.lane.b32.xlu0 %v496, 112
    %v657 = vpop.permute.xlu0 %656
    %658 = vrot.lane.b32.xlu0 %v497, 112
    %v659 = vpop.permute.xlu0 %658
    %660 = vrot.lane.b32.xlu0 %v498, 112
    %v661 = vpop.permute.xlu0 %660
    %662 = vrot.lane.b32.xlu0 %v499, 112
    %v663 = vpop.permute.xlu0 %662
    %vm664 = vcmp.lt.s32.totalorder %v509, 112
    %v665 = vsel %vm664, %v661, %v663
    %v666 = vsel %vm664, %v659, %v661
    %v667 = vsel %vm664, %v657, %v659
    %v668 = vsel %vm664, %v663, %v657
    %v669 = vld [vmem:[#allocation2 + $0xc0] sm:$0xff]
    %v670 = vld [vmem:[#allocation2 + $0xc8] sm:$0xff]
    %v671 = vld [vmem:[#allocation2 + $0xd0] sm:$0xff]
    %v672 = vld [vmem:[#allocation2 + $0xd8] sm:$0xff]
    %v673 = vmul.f32 %v667, %v669
    %v674 = vmul.f32 %v666, %v670
    %v675 = vmul.f32 %v665, %v671
    %v676 = vmul.f32 %v668, %v672
    %677 = vst [vmem:[#allocation3 + $0xe0] sm:$0xff] %v673
    %678 = vst [vmem:[#allocation3 + $0xe8] sm:$0xff] %v674
    %679 = vst [vmem:[#allocation3 + $0xf0] sm:$0xff] %v675
    %680 = vst [vmem:[#allocation3 + $0xf8] sm:$0xff] %v676
    %681 = vrot.lane.b32.xlu0 %v496, 111
    %v682 = vpop.permute.xlu0 %681
    %683 = vrot.lane.b32.xlu0 %v497, 111
    %v684 = vpop.permute.xlu0 %683
    %685 = vrot.lane.b32.xlu0 %v498, 111
    %v686 = vpop.permute.xlu0 %685
    %687 = vrot.lane.b32.xlu0 %v499, 111
    %v688 = vpop.permute.xlu0 %687
    %vm689 = vcmp.lt.s32.totalorder %v509, 111
    %v690 = vsel %vm689, %v686, %v688
    %v691 = vsel %vm689, %v684, %v686
    %v692 = vsel %vm689, %v682, %v684
    %v693 = vsel %vm689, %v688, %v682
    %v694 = vld [vmem:[#allocation2 + $0xe0] sm:$0xff]
    %v695 = vld [vmem:[#allocation2 + $0xe8] sm:$0xff]
    %v696 = vld [vmem:[#allocation2 + $0xf0] sm:$0xff]
    %v697 = vld [vmem:[#allocation2 + $0xf8] sm:$0xff]
    %v698 = vmul.f32 %v692, %v694
    %v699 = vmul.f32 %v691, %v695
    %v700 = vmul.f32 %v690, %v696
    %v701 = vmul.f32 %v693, %v697
    %702 = vst [vmem:[#allocation3 + $0x100] sm:$0xff] %v698
    %703 = vst [vmem:[#allocation3 + $0x108] sm:$0xff] %v699
    %704 = vst [vmem:[#allocation3 + $0x110] sm:$0xff] %v700
    %705 = vst [vmem:[#allocation3 + $0x118] sm:$0xff] %v701
    %v706 = vld [vmem:[%s2 + $0x10] sm:$0xff]
    %v707 = vld [vmem:[#allocation3] sm:$0xff]
    %v708 = vld [vmem:[#allocation3 + $0x8] sm:$0xff]
    %v709 = vld [vmem:[#allocation3 + $0x10] sm:$0xff]
    %v710 = vld [vmem:[#allocation3 + $0x18] sm:$0xff]
    %v711 = vld [vmem:[#allocation3 + $0x20] sm:$0xff]
    %v712 = vld [vmem:[#allocation3 + $0x28] sm:$0xff]
    %v713 = vld [vmem:[#allocation3 + $0x30] sm:$0xff]
    %v714 = vld [vmem:[#allocation3 + $0x38] sm:$0xff]
    %v715 = vld [vmem:[#allocation3 + $0x40] sm:$0xff]
    %v716 = vld [vmem:[#allocation3 + $0x48] sm:$0xff]
    %v717 = vld [vmem:[#allocation3 + $0x50] sm:$0xff]
    %v718 = vld [vmem:[#allocation3 + $0x58] sm:$0xff]
    %v719 = vld [vmem:[#allocation3 + $0x60] sm:$0xff]
    %v720 = vld [vmem:[#allocation3 + $0x68] sm:$0xff]
    %v721 = vld [vmem:[#allocation3 + $0x70] sm:$0xff]
    %v722 = vld [vmem:[#allocation3 + $0x78] sm:$0xff]
    %v723 = vld [vmem:[#allocation3 + $0x80] sm:$0xff]
    %v724 = vld [vmem:[#allocation3 + $0x88] sm:$0xff]
    %v725 = vld [vmem:[#allocation3 + $0x90] sm:$0xff]
    %v726 = vld [vmem:[#allocation3 + $0x98] sm:$0xff]
    %v727 = vld [vmem:[#allocation3 + $0xa0] sm:$0xff]
    %v728 = vld [vmem:[#allocation3 + $0xa8] sm:$0xff]
    %v729 = vld [vmem:[#allocation3 + $0xb0] sm:$0xff]
    %v730 = vld [vmem:[#allocation3 + $0xb8] sm:$0xff]
    %v731 = vld [vmem:[#allocation3 + $0xc0] sm:$0xff]
    %v732 = vld [vmem:[#allocation3 + $0xc8] sm:$0xff]
    %v733 = vld [vmem:[#allocation3 + $0xd0] sm:$0xff]
    %v734 = vld [vmem:[#allocation3 + $0xd8] sm:$0xff]
    %v735 = vld [vmem:[#allocation3 + $0xe0] sm:$0xff]
    %v736 = vld [vmem:[#allocation3 + $0xe8] sm:$0xff]
    %v737 = vld [vmem:[#allocation3 + $0xf0] sm:$0xff]
    %v738 = vld [vmem:[#allocation3 + $0xf8] sm:$0xff]
    %v739 = vld [vmem:[#allocation3 + $0x100] sm:$0xff]
    %v740 = vld [vmem:[#allocation3 + $0x108] sm:$0xff]
    %v741 = vld [vmem:[#allocation3 + $0x110] sm:$0xff]
    %v742 = vld [vmem:[#allocation3 + $0x118] sm:$0xff]
    %vm743 = vcmask 588800
    %v745 = vsel %vm743, %v706, 0
    %747 = vmatprep.subr.mxu0 %v708
    %748 = vmatpush1.msra.mxu0 %v707
    %749 = vmatprep.subr.mxu0 %v712
    %750 = vmatpush1.msra.mxu0 %v711
    %751 = vmatprep.subr.mxu0 %v716
    %752 = vmatpush1.msra.mxu0 %v715
    %753 = vmatprep.subr.mxu0 %v720
    %754 = vmatpush1.msra.mxu0 %v719
    %755 = vmatprep.subr.mxu0 %v724
    %756 = vmatpush1.msra.mxu0 %v723
    %757 = vmatprep.subr.mxu0 %v728
    %758 = vmatpush1.msra.mxu0 %v727
    %759 = vmatprep.subr.mxu0 %v732
    %760 = vmatpush1.msra.mxu0 %v731
    %761 = vmatprep.subr.mxu0 %v736
    %762 = vmatpush1.msra.mxu0 %v735
    %763 = vmatprep.subr.mxu0 %v740
    %764 = vmatpush1.msra.mxu0 %v739
    %765 = vmatprep.subr.mxu0 0.0
    %766 = vmatpush1.msra.mxu0 0.0
    %767 = vmatprep.subr.mxu0 0.0
    %768 = vmatpush1.msra.mxu0 0.0
    %769 = vmatprep.subr.mxu0 0.0
    %770 = vmatpush1.msra.mxu0 0.0
    %771 = vmatprep.subr.mxu0 0.0
    %772 = vmatpush1.msra.mxu0 0.0
    %773 = vmatprep.subr.mxu0 0.0
    %774 = vmatpush1.msra.mxu0 0.0
    %775 = vmatprep.subr.mxu0 0.0
    %776 = vmatpush1.msra.mxu0 0.0
    %777 = vmatprep.subr.mxu0 0.0
    %778 = vmatpush1.msra.mxu0 0.0
    %779 = vmatprep.subr.mxu0 0.0
    %780 = vmatpush1.msra.mxu0 0.0
    %781 = vmatprep.subr.mxu0 0.0
    %782 = vmatpush1.msra.mxu0 0.0
    %783 = vmatprep.subr.mxu0 0.0
    %784 = vmatpush1.msra.mxu0 0.0
    %785 = vmatprep.subr.mxu0 0.0
    %786 = vmatpush1.msra.mxu0 0.0
    %787 = vmatprep.subr.mxu0 0.0
    %788 = vmatpush1.msra.mxu0 0.0
    %789 = vmatprep.subr.mxu0 0.0
    %790 = vmatpush1.msra.mxu0 0.0
    %791 = vmatprep.subr.mxu0 0.0
    %792 = vmatpush1.msra.mxu0 0.0
    %793 = vmatprep.subr.mxu0 0.0
    %794 = vmatpush1.msra.mxu0 0.0
    %795 = vmatprep.subr.mxu0 0.0
    %796 = vmatpush1.msra.mxu0 0.0
    %797 = vmatprep.subr.mxu0 0.0
    %798 = vmatpush1.msra.mxu0 0.0
    %799 = vmatprep.subr.mxu0 0.0
    %800 = vmatpush1.msra.mxu0 0.0
    %801 = vmatprep.subr.mxu0 0.0
    %802 = vmatpush1.msra.mxu0 0.0
    %803 = vmatprep.subr.mxu0 0.0
    %804 = vmatpush1.msra.mxu0 0.0
    %805 = vmatprep.subr.mxu0 0.0
    %806 = vmatpush1.msra.mxu0 0.0
    %807 = vmatprep.subr.mxu0 0.0
    %808 = vmatpush1.msra.mxu0 0.0
    %809 = vmatprep.subr.mxu0 0.0
    %810 = vmatpush1.msra.mxu0 0.0
    %811 = vmatprep.mubr.f32.mxu0 0.0
    %812 = vmatmul.mubr.f32.gmra.mrb[0].mxu0 %v745
    %v813 = vpop.f32.mrb[0].mxu0
    %v814 = vadd.f32 0.0, %v813
    %v815 = vpop.f32.mrb[0].mxu0
    %v816 = vadd.f32 0.0, %v815
    %817 = vdwg.mxu0
    %818 = vmatprep.subr.mxu0 %v710
    %819 = vmatpush1.msra.mxu0 %v709
    %820 = vmatprep.subr.mxu0 %v714
    %821 = vmatpush1.msra.mxu0 %v713
    %822 = vmatprep.subr.mxu0 %v718
    %823 = vmatpush1.msra.mxu0 %v717
    %824 = vmatprep.subr.mxu0 %v722
    %825 = vmatpush1.msra.mxu0 %v721
    %826 = vmatprep.subr.mxu0 %v726
    %827 = vmatpush1.msra.mxu0 %v725
    %828 = vmatprep.subr.mxu0 %v730
    %829 = vmatpush1.msra.mxu0 %v729
    %830 = vmatprep.subr.mxu0 %v734
    %831 = vmatpush1.msra.mxu0 %v733
    %832 = vmatprep.subr.mxu0 %v738
    %833 = vmatpush1.msra.mxu0 %v737
    %834 = vmatprep.subr.mxu0 %v742
    %835 = vmatpush1.msra.mxu0 %v741
    %836 = vmatprep.subr.mxu0 0.0
    %837 = vmatpush1.msra.mxu0 0.0
    %838 = vmatprep.subr.mxu0 0.0
    %839 = vmatpush1.msra.mxu0 0.0
    %840 = vmatprep.subr.mxu0 0.0
    %841 = vmatpush1.msra.mxu0 0.0
    %842 = vmatprep.subr.mxu0 0.0
    %843 = vmatpush1.msra.mxu0 0.0
    %844 = vmatprep.subr.mxu0 0.0
    %845 = vmatpush1.msra.mxu0 0.0
    %846 = vmatprep.subr.mxu0 0.0
    %847 = vmatpush1.msra.mxu0 0.0
    %848 = vmatprep.subr.mxu0 0.0
    %849 = vmatpush1.msra.mxu0 0.0
    %850 = vmatprep.subr.mxu0 0.0
    %851 = vmatpush1.msra.mxu0 0.0
    %852 = vmatprep.subr.mxu0 0.0
    %853 = vmatpush1.msra.mxu0 0.0
    %854 = vmatprep.subr.mxu0 0.0
    %855 = vmatpush1.msra.mxu0 0.0
    %856 = vmatprep.subr.mxu0 0.0
    %857 = vmatpush1.msra.mxu0 0.0
    %858 = vmatprep.subr.mxu0 0.0
    %859 = vmatpush1.msra.mxu0 0.0
    %860 = vmatprep.subr.mxu0 0.0
    %861 = vmatpush1.msra.mxu0 0.0
    %862 = vmatprep.subr.mxu0 0.0
    %863 = vmatpush1.msra.mxu0 0.0
    %864 = vmatprep.subr.mxu0 0.0
    %865 = vmatpush1.msra.mxu0 0.0
    %866 = vmatprep.subr.mxu0 0.0
    %867 = vmatpush1.msra.mxu0 0.0
    %868 = vmatprep.subr.mxu0 0.0
    %869 = vmatpush1.msra.mxu0 0.0
    %870 = vmatprep.subr.mxu0 0.0
    %871 = vmatpush1.msra.mxu0 0.0
    %872 = vmatprep.subr.mxu0 0.0
    %873 = vmatpush1.msra.mxu0 0.0
    %874 = vmatprep.subr.mxu0 0.0
    %875 = vmatpush1.msra.mxu0 0.0
    %876 = vmatprep.subr.mxu0 0.0
    %877 = vmatpush1.msra.mxu0 0.0
    %878 = vmatprep.subr.mxu0 0.0
    %879 = vmatpush1.msra.mxu0 0.0
    %880 = vmatprep.subr.mxu0 0.0
    %881 = vmatpush1.msra.mxu0 0.0
    %882 = vmatprep.mubr.f32.mxu0 0.0
    %883 = vmatmul.mubr.f32.gmra.mrb[0].mxu0 %v745
    %v884 = vpop.f32.mrb[0].mxu0
    %v885 = vadd.f32 0.0, %v884
    %v886 = vpop.f32.mrb[0].mxu0
    %v887 = vadd.f32 0.0, %v886
    %888 = vdwg.mxu0
    %v889 = vld [vmem:[%s2 + $0x18] sm:$0xff]
    %v890 = vld [vmem:[%s2 + $0x20] sm:$0xff]
    %v891 = vld [vmem:[%s3 + $0x10] sm:$0xff]
    %v892 = vld [vmem:[%s3 + $0x18] sm:$0xff]
    %894 = vset.pattern.permute.xlu0 0
    %895 = vperm.xlu0 %894, %v891
    %v896 = vpop.permute.xlu0 %895
    %899 = vset.pattern.permute.xlu0 0
    %900 = vperm.xlu0 %899, %v892
    %v901 = vpop.permute.xlu0 %900
    %vm903 = vcmask 64512
    %v905 = vsel %vm903, %v889, 0
    %v908 = vsel %vm903, %v890, 0
    %910 = vmatprep.subr.mxu0 %v816
    %911 = vmatpush1.msra.mxu0 %v814
    %912 = vmatprep.subr.mxu0 0.0
    %913 = vmatpush1.msra.mxu0 0.0
    %914 = vmatprep.subr.mxu0 0.0
    %915 = vmatpush1.msra.mxu0 0.0
    %916 = vmatprep.subr.mxu0 0.0
    %917 = vmatpush1.msra.mxu0 0.0
    %918 = vmatprep.subr.mxu0 0.0
    %919 = vmatpush1.msra.mxu0 0.0
    %920 = vmatprep.subr.mxu0 0.0
    %921 = vmatpush1.msra.mxu0 0.0
    %922 = vmatprep.subr.mxu0 0.0
    %923 = vmatpush1.msra.mxu0 0.0
    %924 = vmatprep.subr.mxu0 0.0
    %925 = vmatpush1.msra.mxu0 0.0
    %926 = vmatprep.subr.mxu0 0.0
    %927 = vmatpush1.msra.mxu0 0.0
    %928 = vmatprep.subr.mxu0 0.0
    %929 = vmatpush1.msra.mxu0 0.0
    %930 = vmatprep.subr.mxu0 0.0
    %931 = vmatpush1.msra.mxu0 0.0
    %932 = vmatprep.subr.mxu0 0.0
    %933 = vmatpush1.msra.mxu0 0.0
    %934 = vmatprep.subr.mxu0 0.0
    %935 = vmatpush1.msra.mxu0 0.0
    %936 = vmatprep.subr.mxu0 0.0
    %937 = vmatpush1.msra.mxu0 0.0
    %938 = vmatprep.subr.mxu0 0.0
    %939 = vmatpush1.msra.mxu0 0.0
    %940 = vmatprep.subr.mxu0 0.0
    %941 = vmatpush1.msra.mxu0 0.0
    %942 = vmatprep.subr.mxu0 0.0
    %943 = vmatpush1.msra.mxu0 0.0
    %944 = vmatprep.subr.mxu0 0.0
    %945 = vmatpush1.msra.mxu0 0.0
    %946 = vmatprep.subr.mxu0 0.0
    %947 = vmatpush1.msra.mxu0 0.0
    %948 = vmatprep.subr.mxu0 0.0
    %949 = vmatpush1.msra.mxu0 0.0
    %950 = vmatprep.subr.mxu0 0.0
    %951 = vmatpush1.msra.mxu0 0.0
    %952 = vmatprep.subr.mxu0 0.0
    %953 = vmatpush1.msra.mxu0 0.0
    %954 = vmatprep.subr.mxu0 0.0
    %955 = vmatpush1.msra.mxu0 0.0
    %956 = vmatprep.subr.mxu0 0.0
    %957 = vmatpush1.msra.mxu0 0.0
    %958 = vmatprep.subr.mxu0 0.0
    %959 = vmatpush1.msra.mxu0 0.0
    %960 = vmatprep.subr.mxu0 0.0
    %961 = vmatpush1.msra.mxu0 0.0
    %962 = vmatprep.subr.mxu0 0.0
    %963 = vmatpush1.msra.mxu0 0.0
    %964 = vmatprep.subr.mxu0 0.0
    %965 = vmatpush1.msra.mxu0 0.0
    %966 = vmatprep.subr.mxu0 0.0
    %967 = vmatpush1.msra.mxu0 0.0
    %968 = vmatprep.subr.mxu0 0.0
    %969 = vmatpush1.msra.mxu0 0.0
    %970 = vmatprep.subr.mxu0 0.0
    %971 = vmatpush1.msra.mxu0 0.0
    %972 = vmatprep.subr.mxu0 0.0
    %973 = vmatpush1.msra.mxu0 0.0
    %974 = vmatprep.mubr.f32.mxu0 0.0
    %975 = vmatmul.mubr.f32.gmra.mrb[0].mxu0 %v905
    %v976 = vpop.f32.mrb[0].mxu0
    %v977 = vadd.f32 %v896, %v976
    %v978 = vpop.f32.mrb[0].mxu0
    %v979 = vadd.f32 %v896, %v978
    %980 = vmatprep.mubr.f32.mxu0 0.0
    %981 = vmatmul.mubr.f32.gmra.mrb[0].mxu0 %v908
    %v982 = vpop.f32.mrb[0].mxu0
    %v983 = vadd.f32 %v901, %v982
    %v984 = vpop.f32.mrb[0].mxu0
    %v985 = vadd.f32 %v901, %v984
    %986 = vdwg.mxu0
    %987 = vmatprep.subr.mxu0 %v887
    %988 = vmatpush1.msra.mxu0 %v885
    %989 = vmatprep.subr.mxu0 0.0
    %990 = vmatpush1.msra.mxu0 0.0
    %991 = vmatprep.subr.mxu0 0.0
    %992 = vmatpush1.msra.mxu0 0.0
    %993 = vmatprep.subr.mxu0 0.0
    %994 = vmatpush1.msra.mxu0 0.0
    %995 = vmatprep.subr.mxu0 0.0
    %996 = vmatpush1.msra.mxu0 0.0
    %997 = vmatprep.subr.mxu0 0.0
    %998 = vmatpush1.msra.mxu0 0.0
    %999 = vmatprep.subr.mxu0 0.0
    %1000 = vmatpush1.msra.mxu0 0.0
    %1001 = vmatprep.subr.mxu0 0.0
    %1002 = vmatpush1.msra.mxu0 0.0
    %1003 = vmatprep.subr.mxu0 0.0
    %1004 = vmatpush1.msra.mxu0 0.0
    %1005 = vmatprep.subr.mxu0 0.0
    %1006 = vmatpush1.msra.mxu0 0.0
    %1007 = vmatprep.subr.mxu0 0.0
    %1008 = vmatpush1.msra.mxu0 0.0
    %1009 = vmatprep.subr.mxu0 0.0
    %1010 = vmatpush1.msra.mxu0 0.0
    %1011 = vmatprep.subr.mxu0 0.0
    %1012 = vmatpush1.msra.mxu0 0.0
    %1013 = vmatprep.subr.mxu0 0.0
    %1014 = vmatpush1.msra.mxu0 0.0
    %1015 = vmatprep.subr.mxu0 0.0
    %1016 = vmatpush1.msra.mxu0 0.0
    %1017 = vmatprep.subr.mxu0 0.0
    %1018 = vmatpush1.msra.mxu0 0.0
    %1019 = vmatprep.subr.mxu0 0.0
    %1020 = vmatpush1.msra.mxu0 0.0
    %1021 = vmatprep.subr.mxu0 0.0
    %1022 = vmatpush1.msra.mxu0 0.0
    %1023 = vmatprep.subr.mxu0 0.0
    %1024 = vmatpush1.msra.mxu0 0.0
    %1025 = vmatprep.subr.mxu0 0.0
    %1026 = vmatpush1.msra.mxu0 0.0
    %1027 = vmatprep.subr.mxu0 0.0
    %1028 = vmatpush1.msra.mxu0 0.0
    %1029 = vmatprep.subr.mxu0 0.0
    %1030 = vmatpush1.msra.mxu0 0.0
    %1031 = vmatprep.subr.mxu0 0.0
    %1032 = vmatpush1.msra.mxu0 0.0
    %1033 = vmatprep.subr.mxu0 0.0
    %1034 = vmatpush1.msra.mxu0 0.0
    %1035 = vmatprep.subr.mxu0 0.0
    %1036 = vmatpush1.msra.mxu0 0.0
    %1037 = vmatprep.subr.mxu0 0.0
    %1038 = vmatpush1.msra.mxu0 0.0
    %1039 = vmatprep.subr.mxu0 0.0
    %1040 = vmatpush1.msra.mxu0 0.0
    %1041 = vmatprep.subr.mxu0 0.0
    %1042 = vmatpush1.msra.mxu0 0.0
    %1043 = vmatprep.subr.mxu0 0.0
    %1044 = vmatpush1.msra.mxu0 0.0
    %1045 = vmatprep.subr.mxu0 0.0
    %1046 = vmatpush1.msra.mxu0 0.0
    %1047 = vmatprep.subr.mxu0 0.0
    %1048 = vmatpush1.msra.mxu0 0.0
    %1049 = vmatprep.subr.mxu0 0.0
    %1050 = vmatpush1.msra.mxu0 0.0
    %1051 = vmatprep.mubr.f32.mxu0 0.0
    %1052 = vmatmul.mubr.f32.gmra.mrb[0].mxu0 %v905
    %v1053 = vpop.f32.mrb[0].mxu0
    %v1054 = vadd.f32 %v896, %v1053
    %v1055 = vpop.f32.mrb[0].mxu0
    %v1056 = vadd.f32 %v896, %v1055
    %1057 = vmatprep.mubr.f32.mxu0 0.0
    %1058 = vmatmul.mubr.f32.gmra.mrb[0].mxu0 %v908
    %v1059 = vpop.f32.mrb[0].mxu0
    %v1060 = vadd.f32 %v901, %v1059
    %v1061 = vpop.f32.mrb[0].mxu0
    %v1062 = vadd.f32 %v901, %v1061
    %1063 = vdwg.mxu0
    %1064 = vrot.lane.b32.xlu0 %v977, 17
    %v1065 = vpop.permute.xlu0 %1064
    %1066 = vrot.lane.b32.xlu0 %v979, 17
    %v1067 = vpop.permute.xlu0 %1066
    %1068 = vrot.lane.b32.xlu0 %v1054, 17
    %v1069 = vpop.permute.xlu0 %1068
    %1070 = vrot.lane.b32.xlu0 %v1056, 17
    %v1071 = vpop.permute.xlu0 %1070
    %v1072 = vsel %vm510, %v1069, %v1071
    %v1073 = vsel %vm510, %v1067, %v1069
    %v1074 = vsel %vm510, %v1065, %v1067
    %v1075 = vsel %vm510, %v1071, %v1065
    %v1076 = vld [vmem:[#allocation2] sm:$0xff]
    %v1077 = vld [vmem:[#allocation2 + $0x8] sm:$0xff]
    %v1078 = vld [vmem:[#allocation2 + $0x10] sm:$0xff]
    %v1079 = vld [vmem:[#allocation2 + $0x18] sm:$0xff]
    %v1080 = vmul.f32 %v1075, %v1076
    %v1081 = vmul.f32 %v1074, %v1077
    %v1082 = vmul.f32 %v1073, %v1078
    %v1083 = vmul.f32 %v1072, %v1079
    %1084 = vst [vmem:[#allocation3] sm:$0xff] %v1080
    %1085 = vst [vmem:[#allocation3 + $0x8] sm:$0xff] %v1081
    %1086 = vst [vmem:[#allocation3 + $0x10] sm:$0xff] %v1082
    %1087 = vst [vmem:[#allocation3 + $0x18] sm:$0xff] %v1083
    %1088 = vrot.lane.b32.xlu0 %v977, 16
    %v1089 = vpop.permute.xlu0 %1088
    %1090 = vrot.lane.b32.xlu0 %v979, 16
    %v1091 = vpop.permute.xlu0 %1090
    %1092 = vrot.lane.b32.xlu0 %v1054, 16
    %v1093 = vpop.permute.xlu0 %1092
    %1094 = vrot.lane.b32.xlu0 %v1056, 16
    %v1095 = vpop.permute.xlu0 %1094
    %v1096 = vsel %vm535, %v1093, %v1095
    %v1097 = vsel %vm535, %v1091, %v1093
    %v1098 = vsel %vm535, %v1089, %v1091
    %v1099 = vsel %vm535, %v1095, %v1089
    %v1100 = vld [vmem:[#allocation2 + $0x20] sm:$0xff]
    %v1101 = vld [vmem:[#allocation2 + $0x28] sm:$0xff]
    %v1102 = vld [vmem:[#allocation2 + $0x30] sm:$0xff]
    %v1103 = vld [vmem:[#allocation2 + $0x38] sm:$0xff]
    %v1104 = vmul.f32 %v1099, %v1100
    %v1105 = vmul.f32 %v1098, %v1101
    %v1106 = vmul.f32 %v1097, %v1102
    %v1107 = vmul.f32 %v1096, %v1103
    %1108 = vst [vmem:[#allocation3 + $0x20] sm:$0xff] %v1104
    %1109 = vst [vmem:[#allocation3 + $0x28] sm:$0xff] %v1105
    %1110 = vst [vmem:[#allocation3 + $0x30] sm:$0xff] %v1106
    %1111 = vst [vmem:[#allocation3 + $0x38] sm:$0xff] %v1107
    %1112 = vrot.lane.b32.xlu0 %v977, 15
    %v1113 = vpop.permute.xlu0 %1112
    %1114 = vrot.lane.b32.xlu0 %v979, 15
    %v1115 = vpop.permute.xlu0 %1114
    %1116 = vrot.lane.b32.xlu0 %v1054, 15
    %v1117 = vpop.permute.xlu0 %1116
    %1118 = vrot.lane.b32.xlu0 %v1056, 15
    %v1119 = vpop.permute.xlu0 %1118
    %v1120 = vsel %vm560, %v1117, %v1119
    %v1121 = vsel %vm560, %v1115, %v1117
    %v1122 = vsel %vm560, %v1113, %v1115
    %v1123 = vsel %vm560, %v1119, %v1113
    %v1124 = vld [vmem:[#allocation2 + $0x40] sm:$0xff]
    %v1125 = vld [vmem:[#allocation2 + $0x48] sm:$0xff]
    %v1126 = vld [vmem:[#allocation2 + $0x50] sm:$0xff]
    %v1127 = vld [vmem:[#allocation2 + $0x58] sm:$0xff]
    %v1128 = vmul.f32 %v1123, %v1124
    %v1129 = vmul.f32 %v1122, %v1125
    %v1130 = vmul.f32 %v1121, %v1126
    %v1131 = vmul.f32 %v1120, %v1127
    %1132 = vst [vmem:[#allocation3 + $0x40] sm:$0xff] %v1128
    %1133 = vst [vmem:[#allocation3 + $0x48] sm:$0xff] %v1129
    %1134 = vst [vmem:[#allocation3 + $0x50] sm:$0xff] %v1130
    %1135 = vst [vmem:[#allocation3 + $0x58] sm:$0xff] %v1131
    %1136 = vrot.lane.b32.xlu0 %v977, 1
    %v1137 = vpop.permute.xlu0 %1136
    %1138 = vrot.lane.b32.xlu0 %v979, 1
    %v1139 = vpop.permute.xlu0 %1138
    %1140 = vrot.lane.b32.xlu0 %v1054, 1
    %v1141 = vpop.permute.xlu0 %1140
    %1142 = vrot.lane.b32.xlu0 %v1056, 1
    %v1143 = vpop.permute.xlu0 %1142
    %v1144 = vsel %vm585, %v1141, %v1143
    %v1145 = vsel %vm585, %v1139, %v1141
    %v1146 = vsel %vm585, %v1137, %v1139
    %v1147 = vsel %vm585, %v1143, %v1137
    %v1148 = vld [vmem:[#allocation2 + $0x60] sm:$0xff]
    %v1149 = vld [vmem:[#allocation2 + $0x68] sm:$0xff]
    %v1150 = vld [vmem:[#allocation2 + $0x70] sm:$0xff]
    %v1151 = vld [vmem:[#allocation2 + $0x78] sm:$0xff]
    %v1152 = vmul.f32 %v1147, %v1148
    %v1153 = vmul.f32 %v1146, %v1149
    %v1154 = vmul.f32 %v1145, %v1150
    %v1155 = vmul.f32 %v1144, %v1151
    %1156 = vst [vmem:[#allocation3 + $0x60] sm:$0xff] %v1152
    %1157 = vst [vmem:[#allocation3 + $0x68] sm:$0xff] %v1153
    %1158 = vst [vmem:[#allocation3 + $0x70] sm:$0xff] %v1154
    %1159 = vst [vmem:[#allocation3 + $0x78] sm:$0xff] %v1155
    %1160 = vst [vmem:[#allocation3 + $0x80] sm:$0xff] %v977
    %1161 = vst [vmem:[#allocation3 + $0x88] sm:$0xff] %v979
    %1162 = vst [vmem:[#allocation3 + $0x90] sm:$0xff] %v1054
    %1163 = vst [vmem:[#allocation3 + $0x98] sm:$0xff] %v1056
    %1164 = vrot.lane.b32.xlu0 %v977, 127
    %v1165 = vpop.permute.xlu0 %1164
    %1166 = vrot.lane.b32.xlu0 %v979, 127
    %v1167 = vpop.permute.xlu0 %1166
    %1168 = vrot.lane.b32.xlu0 %v1054, 127
    %v1169 = vpop.permute.xlu0 %1168
    %1170 = vrot.lane.b32.xlu0 %v1056, 127
    %v1171 = vpop.permute.xlu0 %1170
    %v1172 = vsel %vm614, %v1169, %v1171
    %v1173 = vsel %vm614, %v1167, %v1169
    %v1174 = vsel %vm614, %v1165, %v1167
    %v1175 = vsel %vm614, %v1171, %v1165
    %v1176 = vld [vmem:[#allocation2 + $0x80] sm:$0xff]
    %v1177 = vld [vmem:[#allocation2 + $0x88] sm:$0xff]
    %v1178 = vld [vmem:[#allocation2 + $0x90] sm:$0xff]
    %v1179 = vld [vmem:[#allocation2 + $0x98] sm:$0xff]
    %v1180 = vmul.f32 %v1174, %v1176
    %v1181 = vmul.f32 %v1173, %v1177
    %v1182 = vmul.f32 %v1172, %v1178
    %v1183 = vmul.f32 %v1175, %v1179
    %1184 = vst [vmem:[#allocation3 + $0xa0] sm:$0xff] %v1180
    %1185 = vst [vmem:[#allocation3 + $0xa8] sm:$0xff] %v1181
    %1186 = vst [vmem:[#allocation3 + $0xb0] sm:$0xff] %v1182
    %1187 = vst [vmem:[#allocation3 + $0xb8] sm:$0xff] %v1183
    %1188 = vrot.lane.b32.xlu0 %v977, 113
    %v1189 = vpop.permute.xlu0 %1188
    %1190 = vrot.lane.b32.xlu0 %v979, 113
    %v1191 = vpop.permute.xlu0 %1190
    %1192 = vrot.lane.b32.xlu0 %v1054, 113
    %v1193 = vpop.permute.xlu0 %1192
    %1194 = vrot.lane.b32.xlu0 %v1056, 113
    %v1195 = vpop.permute.xlu0 %1194
    %v1196 = vsel %vm639, %v1193, %v1195
    %v1197 = vsel %vm639, %v1191, %v1193
    %v1198 = vsel %vm639, %v1189, %v1191
    %v1199 = vsel %vm639, %v1195, %v1189
    %v1200 = vld [vmem:[#allocation2 + $0xa0] sm:$0xff]
    %v1201 = vld [vmem:[#allocation2 + $0xa8] sm:$0xff]
    %v1202 = vld [vmem:[#allocation2 + $0xb0] sm:$0xff]
    %v1203 = vld [vmem:[#allocation2 + $0xb8] sm:$0xff]
    %v1204 = vmul.f32 %v1198, %v1200
    %v1205 = vmul.f32 %v1197, %v1201
    %v1206 = vmul.f32 %v1196, %v1202
    %v1207 = vmul.f32 %v1199, %v1203
    %1208 = vst [vmem:[#allocation3 + $0xc0] sm:$0xff] %v1204
    %1209 = vst [vmem:[#allocation3 + $0xc8] sm:$0xff] %v1205
    %1210 = vst [vmem:[#allocation3 + $0xd0] sm:$0xff] %v1206
    %1211 = vst [vmem:[#allocation3 + $0xd8] sm:$0xff] %v1207
    %1212 = vrot.lane.b32.xlu0 %v977, 112
    %v1213 = vpop.permute.xlu0 %1212
    %1214 = vrot.lane.b32.xlu0 %v979, 112
    %v1215 = vpop.permute.xlu0 %1214
    %1216 = vrot.lane.b32.xlu0 %v1054, 112
    %v1217 = vpop.permute.xlu0 %1216
    %1218 = vrot.lane.b32.xlu0 %v1056, 112
    %v1219 = vpop.permute.xlu0 %1218
    %v1220 = vsel %vm664, %v1217, %v1219
    %v1221 = vsel %vm664, %v1215, %v1217
    %v1222 = vsel %vm664, %v1213, %v1215
    %v1223 = vsel %vm664, %v1219, %v1213
    %v1224 = vld [vmem:[#allocation2 + $0xc0] sm:$0xff]
    %v1225 = vld [vmem:[#allocation2 + $0xc8] sm:$0xff]
    %v1226 = vld [vmem:[#allocation2 + $0xd0] sm:$0xff]
    %v1227 = vld [vmem:[#allocation2 + $0xd8] sm:$0xff]
    %v1228 = vmul.f32 %v1222, %v1224
    %v1229 = vmul.f32 %v1221, %v1225
    %v1230 = vmul.f32 %v1220, %v1226
    %v1231 = vmul.f32 %v1223, %v1227
    %1232 = vst [vmem:[#allocation3 + $0xe0] sm:$0xff] %v1228
    %1233 = vst [vmem:[#allocation3 + $0xe8] sm:$0xff] %v1229
    %1234 = vst [vmem:[#allocation3 + $0xf0] sm:$0xff] %v1230
    %1235 = vst [vmem:[#allocation3 + $0xf8] sm:$0xff] %v1231
    %1236 = vrot.lane.b32.xlu0 %v977, 111
    %v1237 = vpop.permute.xlu0 %1236
    %1238 = vrot.lane.b32.xlu0 %v979, 111
    %v1239 = vpop.permute.xlu0 %1238
    %1240 = vrot.lane.b32.xlu0 %v1054, 111
    %v1241 = vpop.permute.xlu0 %1240
    %1242 = vrot.lane.b32.xlu0 %v1056, 111
    %v1243 = vpop.permute.xlu0 %1242
    %v1244 = vsel %vm689, %v1241, %v1243
    %v1245 = vsel %vm689, %v1239, %v1241
    %v1246 = vsel %vm689, %v1237, %v1239
    %v1247 = vsel %vm689, %v1243, %v1237
    %v1248 = vld [vmem:[#allocation2 + $0xe0] sm:$0xff]
    %v1249 = vld [vmem:[#allocation2 + $0xe8] sm:$0xff]
    %v1250 = vld [vmem:[#allocation2 + $0xf0] sm:$0xff]
    %v1251 = vld [vmem:[#allocation2 + $0xf8] sm:$0xff]
    %v1252 = vmul.f32 %v1246, %v1248
    %v1253 = vmul.f32 %v1245, %v1249
    %v1254 = vmul.f32 %v1244, %v1250
    %v1255 = vmul.f32 %v1247, %v1251
    %1256 = vst [vmem:[#allocation3 + $0x100] sm:$0xff] %v1252
    %1257 = vst [vmem:[#allocation3 + $0x108] sm:$0xff] %v1253
    %1258 = vst [vmem:[#allocation3 + $0x110] sm:$0xff] %v1254
    %1259 = vst [vmem:[#allocation3 + $0x118] sm:$0xff] %v1255
    %v1260 = vld [vmem:[%s2 + $0x28] sm:$0xff]
    %v1261 = vld [vmem:[#allocation3] sm:$0xff]
    %v1262 = vld [vmem:[#allocation3 + $0x8] sm:$0xff]
    %v1263 = vld [vmem:[#allocation3 + $0x10] sm:$0xff]
    %v1264 = vld [vmem:[#allocation3 + $0x18] sm:$0xff]
    %v1265 = vld [vmem:[#allocation3 + $0x20] sm:$0xff]
    %v1266 = vld [vmem:[#allocation3 + $0x28] sm:$0xff]
    %v1267 = vld [vmem:[#allocation3 + $0x30] sm:$0xff]
    %v1268 = vld [vmem:[#allocation3 + $0x38] sm:$0xff]
    %v1269 = vld [vmem:[#allocation3 + $0x40] sm:$0xff]
    %v1270 = vld [vmem:[#allocation3 + $0x48] sm:$0xff]
    %v1271 = vld [vmem:[#allocation3 + $0x50] sm:$0xff]
    %v1272 = vld [vmem:[#allocation3 + $0x58] sm:$0xff]
    %v1273 = vld [vmem:[#allocation3 + $0x60] sm:$0xff]
    %v1274 = vld [vmem:[#allocation3 + $0x68] sm:$0xff]
    %v1275 = vld [vmem:[#allocation3 + $0x70] sm:$0xff]
    %v1276 = vld [vmem:[#allocation3 + $0x78] sm:$0xff]
    %v1277 = vld [vmem:[#allocation3 + $0x80] sm:$0xff]
    %v1278 = vld [vmem:[#allocation3 + $0x88] sm:$0xff]
    %v1279 = vld [vmem:[#allocation3 + $0x90] sm:$0xff]
    %v1280 = vld [vmem:[#allocation3 + $0x98] sm:$0xff]
    %v1281 = vld [vmem:[#allocation3 + $0xa0] sm:$0xff]
    %v1282 = vld [vmem:[#allocation3 + $0xa8] sm:$0xff]
    %v1283 = vld [vmem:[#allocation3 + $0xb0] sm:$0xff]
    %v1284 = vld [vmem:[#allocation3 + $0xb8] sm:$0xff]
    %v1285 = vld [vmem:[#allocation3 + $0xc0] sm:$0xff]
    %v1286 = vld [vmem:[#allocation3 + $0xc8] sm:$0xff]
    %v1287 = vld [vmem:[#allocation3 + $0xd0] sm:$0xff]
    %v1288 = vld [vmem:[#allocation3 + $0xd8] sm:$0xff]
    %v1289 = vld [vmem:[#allocation3 + $0xe0] sm:$0xff]
    %v1290 = vld [vmem:[#allocation3 + $0xe8] sm:$0xff]
    %v1291 = vld [vmem:[#allocation3 + $0xf0] sm:$0xff]
    %v1292 = vld [vmem:[#allocation3 + $0xf8] sm:$0xff]
    %v1293 = vld [vmem:[#allocation3 + $0x100] sm:$0xff]
    %v1294 = vld [vmem:[#allocation3 + $0x108] sm:$0xff]
    %v1295 = vld [vmem:[#allocation3 + $0x110] sm:$0xff]
    %v1296 = vld [vmem:[#allocation3 + $0x118] sm:$0xff]
    %v1297 = vld [vmem:[%s3 + $0x20] sm:$0xff]
    %1299 = vset.pattern.permute.xlu0 0
    %1300 = vperm.xlu0 %1299, %v1297
    %v1301 = vpop.permute.xlu0 %1300
    %v1304 = vsel %vm743, %v1260, 0
    %1306 = vmatprep.subr.mxu0 %v1262
    %1307 = vmatpush1.msra.mxu0 %v1261
    %1308 = vmatprep.subr.mxu0 %v1266
    %1309 = vmatpush1.msra.mxu0 %v1265
    %1310 = vmatprep.subr.mxu0 %v1270
    %1311 = vmatpush1.msra.mxu0 %v1269
    %1312 = vmatprep.subr.mxu0 %v1274
    %1313 = vmatpush1.msra.mxu0 %v1273
    %1314 = vmatprep.subr.mxu0 %v1278
    %1315 = vmatpush1.msra.mxu0 %v1277
    %1316 = vmatprep.subr.mxu0 %v1282
    %1317 = vmatpush1.msra.mxu0 %v1281
    %1318 = vmatprep.subr.mxu0 %v1286
    %1319 = vmatpush1.msra.mxu0 %v1285
    %1320 = vmatprep.subr.mxu0 %v1290
    %1321 = vmatpush1.msra.mxu0 %v1289
    %1322 = vmatprep.subr.mxu0 %v1294
    %1323 = vmatpush1.msra.mxu0 %v1293
    %1324 = vmatprep.subr.mxu0 0.0
    %1325 = vmatpush1.msra.mxu0 0.0
    %1326 = vmatprep.subr.mxu0 0.0
    %1327 = vmatpush1.msra.mxu0 0.0
    %1328 = vmatprep.subr.mxu0 0.0
    %1329 = vmatpush1.msra.mxu0 0.0
    %1330 = vmatprep.subr.mxu0 0.0
    %1331 = vmatpush1.msra.mxu0 0.0
    %1332 = vmatprep.subr.mxu0 0.0
    %1333 = vmatpush1.msra.mxu0 0.0
    %1334 = vmatprep.subr.mxu0 0.0
    %1335 = vmatpush1.msra.mxu0 0.0
    %1336 = vmatprep.subr.mxu0 0.0
    %1337 = vmatpush1.msra.mxu0 0.0
    %1338 = vmatprep.subr.mxu0 0.0
    %1339 = vmatpush1.msra.mxu0 0.0
    %1340 = vmatprep.subr.mxu0 0.0
    %1341 = vmatpush1.msra.mxu0 0.0
    %1342 = vmatprep.subr.mxu0 0.0
    %1343 = vmatpush1.msra.mxu0 0.0
    %1344 = vmatprep.subr.mxu0 0.0
    %1345 = vmatpush1.msra.mxu0 0.0
    %1346 = vmatprep.subr.mxu0 0.0
    %1347 = vmatpush1.msra.mxu0 0.0
    %1348 = vmatprep.subr.mxu0 0.0
    %1349 = vmatpush1.msra.mxu0 0.0
    %1350 = vmatprep.subr.mxu0 0.0
    %1351 = vmatpush1.msra.mxu0 0.0
    %1352 = vmatprep.subr.mxu0 0.0
    %1353 = vmatpush1.msra.mxu0 0.0
    %1354 = vmatprep.subr.mxu0 0.0
    %1355 = vmatpush1.msra.mxu0 0.0
    %1356 = vmatprep.subr.mxu0 0.0
    %1357 = vmatpush1.msra.mxu0 0.0
    %1358 = vmatprep.subr.mxu0 0.0
    %1359 = vmatpush1.msra.mxu0 0.0
    %1360 = vmatprep.subr.mxu0 0.0
    %1361 = vmatpush1.msra.mxu0 0.0
    %1362 = vmatprep.subr.mxu0 0.0
    %1363 = vmatpush1.msra.mxu0 0.0
    %1364 = vmatprep.subr.mxu0 0.0
    %1365 = vmatpush1.msra.mxu0 0.0
    %1366 = vmatprep.subr.mxu0 0.0
    %1367 = vmatpush1.msra.mxu0 0.0
    %1368 = vmatprep.subr.mxu0 0.0
    %1369 = vmatpush1.msra.mxu0 0.0
    %1370 = vmatprep.mubr.f32.mxu0 0.0
    %1371 = vmatmul.mubr.f32.gmra.mrb[0].mxu0 %v1304
    %v1372 = vpop.f32.mrb[0].mxu0
    %v1373 = vadd.f32 %v1301, %v1372
    %v1374 = vpop.f32.mrb[0].mxu0
    %v1375 = vadd.f32 %v1301, %v1374
    %1376 = vdwg.mxu0
    %1377 = vmatprep.subr.mxu0 %v1264
    %1378 = vmatpush1.msra.mxu0 %v1263
    %1379 = vmatprep.subr.mxu0 %v1268
    %1380 = vmatpush1.msra.mxu0 %v1267
    %1381 = vmatprep.subr.mxu0 %v1272
    %1382 = vmatpush1.msra.mxu0 %v1271
    %1383 = vmatprep.subr.mxu0 %v1276
    %1384 = vmatpush1.msra.mxu0 %v1275
    %1385 = vmatprep.subr.mxu0 %v1280
    %1386 = vmatpush1.msra.mxu0 %v1279
    %1387 = vmatprep.subr.mxu0 %v1284
    %1388 = vmatpush1.msra.mxu0 %v1283
    %1389 = vmatprep.subr.mxu0 %v1288
    %1390 = vmatpush1.msra.mxu0 %v1287
    %1391 = vmatprep.subr.mxu0 %v1292
    %1392 = vmatpush1.msra.mxu0 %v1291
    %1393 = vmatprep.subr.mxu0 %v1296
    %1394 = vmatpush1.msra.mxu0 %v1295
    %1395 = vmatprep.subr.mxu0 0.0
    %1396 = vmatpush1.msra.mxu0 0.0
    %1397 = vmatprep.subr.mxu0 0.0
    %1398 = vmatpush1.msra.mxu0 0.0
    %1399 = vmatprep.subr.mxu0 0.0
    %1400 = vmatpush1.msra.mxu0 0.0
    %1401 = vmatprep.subr.mxu0 0.0
    %1402 = vmatpush1.msra.mxu0 0.0
    %1403 = vmatprep.subr.mxu0 0.0
    %1404 = vmatpush1.msra.mxu0 0.0
    %1405 = vmatprep.subr.mxu0 0.0
    %1406 = vmatpush1.msra.mxu0 0.0
    %1407 = vmatprep.subr.mxu0 0.0
    %1408 = vmatpush1.msra.mxu0 0.0
    %1409 = vmatprep.subr.mxu0 0.0
    %1410 = vmatpush1.msra.mxu0 0.0
    %1411 = vmatprep.subr.mxu0 0.0
    %1412 = vmatpush1.msra.mxu0 0.0
    %1413 = vmatprep.subr.mxu0 0.0
    %1414 = vmatpush1.msra.mxu0 0.0
    %1415 = vmatprep.subr.mxu0 0.0
    %1416 = vmatpush1.msra.mxu0 0.0
    %1417 = vmatprep.subr.mxu0 0.0
    %1418 = vmatpush1.msra.mxu0 0.0
    %1419 = vmatprep.subr.mxu0 0.0
    %1420 = vmatpush1.msra.mxu0 0.0
    %1421 = vmatprep.subr.mxu0 0.0
    %1422 = vmatpush1.msra.mxu0 0.0
    %1423 = vmatprep.subr.mxu0 0.0
    %1424 = vmatpush1.msra.mxu0 0.0
    %1425 = vmatprep.subr.mxu0 0.0
    %1426 = vmatpush1.msra.mxu0 0.0
    %1427 = vmatprep.subr.mxu0 0.0
    %1428 = vmatpush1.msra.mxu0 0.0
    %1429 = vmatprep.subr.mxu0 0.0
    %1430 = vmatpush1.msra.mxu0 0.0
    %1431 = vmatprep.subr.mxu0 0.0
    %1432 = vmatpush1.msra.mxu0 0.0
    %1433 = vmatprep.subr.mxu0 0.0
    %1434 = vmatpush1.msra.mxu0 0.0
    %1435 = vmatprep.subr.mxu0 0.0
    %1436 = vmatpush1.msra.mxu0 0.0
    %1437 = vmatprep.subr.mxu0 0.0
    %1438 = vmatpush1.msra.mxu0 0.0
    %1439 = vmatprep.subr.mxu0 0.0
    %1440 = vmatpush1.msra.mxu0 0.0
    %1441 = vmatprep.mubr.f32.mxu0 0.0
    %1442 = vmatmul.mubr.f32.gmra.mrb[0].mxu0 %v1304
    %v1443 = vpop.f32.mrb[0].mxu0
    %v1444 = vadd.f32 %v1301, %v1443
    %v1445 = vpop.f32.mrb[0].mxu0
    %v1446 = vadd.f32 %v1301, %v1445
    %1447 = vdwg.mxu0
    %v1448 = vmul.f32 %v1373, %v1373
    %v1449 = vmul.f32 %v1375, %v1375
    %v1450 = vmul.f32 %v1444, %v1444
    %v1451 = vmul.f32 %v1446, %v1446
    %v1452 = vmul.f32 %v1373, %v1448
    %v1453 = vmul.f32 %v1375, %v1449
    %v1454 = vmul.f32 %v1444, %v1450
    %v1455 = vmul.f32 %v1446, %v1451
    %v1456 = vmul.f32 %v1452, 0.044715
    %v1457 = vmul.f32 %v1453, 0.044715
    %v1458 = vmul.f32 %v1454, 0.044715
    %v1459 = vmul.f32 %v1455, 0.044715
    %v1460 = vadd.f32 %v1373, %v1456
    %v1461 = vadd.f32 %v1375, %v1457
    %v1462 = vadd.f32 %v1444, %v1458
    %v1463 = vadd.f32 %v1446, %v1459
    %v1464 = vmul.f32 %v1460, 0.7978846
    %v1465 = vmul.f32 %v1461, 0.7978846
    %v1466 = vmul.f32 %v1462, 0.7978846
    %v1467 = vmul.f32 %v1463, 0.7978846
    %v1468 = vtanh.pop %v1464
    %v1469 = vtanh.pop %v1465
    %v1470 = vtanh.pop %v1466
    %v1471 = vtanh.pop %v1467
    %v1472 = vadd.f32 %v1468, 1.0
    %v1473 = vadd.f32 %v1469, 1.0
    %v1474 = vadd.f32 %v1470, 1.0
    %v1475 = vadd.f32 %v1471, 1.0
    %v1476 = vmul.f32 %v1472, 0.5
    %v1477 = vmul.f32 %v1473, 0.5
    %v1478 = vmul.f32 %v1474, 0.5
    %v1479 = vmul.f32 %v1475, 0.5
    %v1480 = vmul.f32 %v1373, %v1476
    %v1481 = vmul.f32 %v1375, %v1477
    %v1482 = vmul.f32 %v1444, %v1478
    %v1483 = vmul.f32 %v1446, %v1479
    %v1484 = vmul.f32 %v1480, %v983
    %v1485 = vmul.f32 %v1481, %v985
    %v1486 = vmul.f32 %v1482, %v1060
    %v1487 = vmul.f32 %v1483, %v1062
    %v1488 = vld [vmem:[%s2 + $0x30] sm:$0xff]
    %v1489 = vld [vmem:[%s3 + $0x28] sm:$0xff]
    %1491 = vset.pattern.permute.xlu0 0
    %1492 = vperm.xlu0 %1491, %v1489
    %v1493 = vpop.permute.xlu0 %1492
    %v1496 = vsel %vm903, %v1488, 0
    %1498 = vmatprep.subr.mxu0 %v1485
    %1499 = vmatpush1.msra.mxu0 %v1484
    %1500 = vmatprep.subr.mxu0 0.0
    %1501 = vmatpush1.msra.mxu0 0.0
    %1502 = vmatprep.subr.mxu0 0.0
    %1503 = vmatpush1.msra.mxu0 0.0
    %1504 = vmatprep.subr.mxu0 0.0
    %1505 = vmatpush1.msra.mxu0 0.0
    %1506 = vmatprep.subr.mxu0 0.0
    %1507 = vmatpush1.msra.mxu0 0.0
    %1508 = vmatprep.subr.mxu0 0.0
    %1509 = vmatpush1.msra.mxu0 0.0
    %1510 = vmatprep.subr.mxu0 0.0
    %1511 = vmatpush1.msra.mxu0 0.0
    %1512 = vmatprep.subr.mxu0 0.0
    %1513 = vmatpush1.msra.mxu0 0.0
    %1514 = vmatprep.subr.mxu0 0.0
    %1515 = vmatpush1.msra.mxu0 0.0
    %1516 = vmatprep.subr.mxu0 0.0
    %1517 = vmatpush1.msra.mxu0 0.0
    %1518 = vmatprep.subr.mxu0 0.0
    %1519 = vmatpush1.msra.mxu0 0.0
    %1520 = vmatprep.subr.mxu0 0.0
    %1521 = vmatpush1.msra.mxu0 0.0
    %1522 = vmatprep.subr.mxu0 0.0
    %1523 = vmatpush1.msra.mxu0 0.0
    %1524 = vmatprep.subr.mxu0 0.0
    %1525 = vmatpush1.msra.mxu0 0.0
    %1526 = vmatprep.subr.mxu0 0.0
    %1527 = vmatpush1.msra.mxu0 0.0
    %1528 = vmatprep.subr.mxu0 0.0
    %1529 = vmatpush1.msra.mxu0 0.0
    %1530 = vmatprep.subr.mxu0 0.0
    %1531 = vmatpush1.msra.mxu0 0.0
    %1532 = vmatprep.subr.mxu0 0.0
    %1533 = vmatpush1.msra.mxu0 0.0
    %1534 = vmatprep.subr.mxu0 0.0
    %1535 = vmatpush1.msra.mxu0 0.0
    %1536 = vmatprep.subr.mxu0 0.0
    %1537 = vmatpush1.msra.mxu0 0.0
    %1538 = vmatprep.subr.mxu0 0.0
    %1539 = vmatpush1.msra.mxu0 0.0
    %1540 = vmatprep.subr.mxu0 0.0
    %1541 = vmatpush1.msra.mxu0 0.0
    %1542 = vmatprep.subr.mxu0 0.0
    %1543 = vmatpush1.msra.mxu0 0.0
    %1544 = vmatprep.subr.mxu0 0.0
    %1545 = vmatpush1.msra.mxu0 0.0
    %1546 = vmatprep.subr.mxu0 0.0
    %1547 = vmatpush1.msra.mxu0 0.0
    %1548 = vmatprep.subr.mxu0 0.0
    %1549 = vmatpush1.msra.mxu0 0.0
    %1550 = vmatprep.subr.mxu0 0.0
    %1551 = vmatpush1.msra.mxu0 0.0
    %1552 = vmatprep.subr.mxu0 0.0
    %1553 = vmatpush1.msra.mxu0 0.0
    %1554 = vmatprep.subr.mxu0 0.0
    %1555 = vmatpush1.msra.mxu0 0.0
    %1556 = vmatprep.subr.mxu0 0.0
    %1557 = vmatpush1.msra.mxu0 0.0
    %1558 = vmatprep.subr.mxu0 0.0
    %1559 = vmatpush1.msra.mxu0 0.0
    %1560 = vmatprep.subr.mxu0 0.0
    %1561 = vmatpush1.msra.mxu0 0.0
    %1562 = vmatprep.mubr.f32.mxu0 0.0
    %1563 = vmatmul.mubr.f32.gmra.mrb[0].mxu0 %v1496
    %v1564 = vpop.f32.mrb[0].mxu0
    %v1565 = vadd.f32 %v1493, %v1564
    %v1566 = vpop.f32.mrb[0].mxu0
    %v1567 = vadd.f32 %v1493, %v1566
    %1568 = vdwg.mxu0
    %1569 = vmatprep.subr.mxu0 %v1487
    %1570 = vmatpush1.msra.mxu0 %v1486
    %1571 = vmatprep.subr.mxu0 0.0
    %1572 = vmatpush1.msra.mxu0 0.0
    %1573 = vmatprep.subr.mxu0 0.0
    %1574 = vmatpush1.msra.mxu0 0.0
    %1575 = vmatprep.subr.mxu0 0.0
    %1576 = vmatpush1.msra.mxu0 0.0
    %1577 = vmatprep.subr.mxu0 0.0
    %1578 = vmatpush1.msra.mxu0 0.0
    %1579 = vmatprep.subr.mxu0 0.0
    %1580 = vmatpush1.msra.mxu0 0.0
    %1581 = vmatprep.subr.mxu0 0.0
    %1582 = vmatpush1.msra.mxu0 0.0
    %1583 = vmatprep.subr.mxu0 0.0
    %1584 = vmatpush1.msra.mxu0 0.0
    %1585 = vmatprep.subr.mxu0 0.0
    %1586 = vmatpush1.msra.mxu0 0.0
    %1587 = vmatprep.subr.mxu0 0.0
    %1588 = vmatpush1.msra.mxu0 0.0
    %1589 = vmatprep.subr.mxu0 0.0
    %1590 = vmatpush1.msra.mxu0 0.0
    %1591 = vmatprep.subr.mxu0 0.0
    %1592 = vmatpush1.msra.mxu0 0.0
    %1593 = vmatprep.subr.mxu0 0.0
    %1594 = vmatpush1.msra.mxu0 0.0
    %1595 = vmatprep.subr.mxu0 0.0
    %1596 = vmatpush1.msra.mxu0 0.0
    %1597 = vmatprep.subr.mxu0 0.0
    %1598 = vmatpush1.msra.mxu0 0.0
    %1599 = vmatprep.subr.mxu0 0.0
    %1600 = vmatpush1.msra.mxu0 0.0
    %1601 = vmatprep.subr.mxu0 0.0
    %1602 = vmatpush1.msra.mxu0 0.0
    %1603 = vmatprep.subr.mxu0 0.0
    %1604 = vmatpush1.msra.mxu0 0.0
    %1605 = vmatprep.subr.mxu0 0.0
    %1606 = vmatpush1.msra.mxu0 0.0
    %1607 = vmatprep.subr.mxu0 0.0
    %1608 = vmatpush1.msra.mxu0 0.0
    %1609 = vmatprep.subr.mxu0 0.0
    %1610 = vmatpush1.msra.mxu0 0.0
    %1611 = vmatprep.subr.mxu0 0.0
    %1612 = vmatpush1.msra.mxu0 0.0
    %1613 = vmatprep.subr.mxu0 0.0
    %1614 = vmatpush1.msra.mxu0 0.0
    %1615 = vmatprep.subr.mxu0 0.0
    %1616 = vmatpush1.msra.mxu0 0.0
    %1617 = vmatprep.subr.mxu0 0.0
    %1618 = vmatpush1.msra.mxu0 0.0
    %1619 = vmatprep.subr.mxu0 0.0
    %1620 = vmatpush1.msra.mxu0 0.0
    %1621 = vmatprep.subr.mxu0 0.0
    %1622 = vmatpush1.msra.mxu0 0.0
    %1623 = vmatprep.subr.mxu0 0.0
    %1624 = vmatpush1.msra.mxu0 0.0
    %1625 = vmatprep.subr.mxu0 0.0
    %1626 = vmatpush1.msra.mxu0 0.0
    %1627 = vmatprep.subr.mxu0 0.0
    %1628 = vmatpush1.msra.mxu0 0.0
    %1629 = vmatprep.subr.mxu0 0.0
    %1630 = vmatpush1.msra.mxu0 0.0
    %1631 = vmatprep.subr.mxu0 0.0
    %1632 = vmatpush1.msra.mxu0 0.0
    %1633 = vmatprep.mubr.f32.mxu0 0.0
    %1634 = vmatmul.mubr.f32.gmra.mrb[0].mxu0 %v1496
    %v1635 = vpop.f32.mrb[0].mxu0
    %v1636 = vadd.f32 %v1493, %v1635
    %v1637 = vpop.f32.mrb[0].mxu0
    %v1638 = vadd.f32 %v1493, %v1637
    %1639 = vdwg.mxu0
    %v1640 = vadd.f32 %v814, %v1565
    %v1641 = vadd.f32 %v816, %v1567
    %v1642 = vadd.f32 %v885, %v1636
    %v1643 = vadd.f32 %v887, %v1638
    %v1644 = vadd.f32 %v496, %v1640
    %v1645 = vadd.f32 %v497, %v1641
    %v1646 = vadd.f32 %v498, %v1642
    %v1647 = vadd.f32 %v499, %v1643
    %1648 = vst [vmem:[#allocation4] sm:$0xff] %v492
    %1649 = vst [vmem:[#allocation4 + $0x8] sm:$0xff] %v493
    %1650 = vst [vmem:[#allocation4 + $0x10] sm:$0xff] %v494
    %1651 = vst [vmem:[#allocation4 + $0x18] sm:$0xff] %v495
    %1652 = vst [vmem:[#allocation4 + $0x20] sm:$0xff] %v496
    %1653 = vst [vmem:[#allocation4 + $0x28] sm:$0xff] %v497
    %1654 = vst [vmem:[#allocation4 + $0x30] sm:$0xff] %v498
    %1655 = vst [vmem:[#allocation4 + $0x38] sm:$0xff] %v499
    %1656 = vst [vmem:[#allocation4 + $0x40] sm:$0xff] %v1644
    %1657 = vst [vmem:[#allocation4 + $0x48] sm:$0xff] %v1645
    %1658 = vst [vmem:[#allocation4 + $0x50] sm:$0xff] %v1646
    %1659 = vst [vmem:[#allocation4 + $0x58] sm:$0xff] %v1647
    %v1660 = vld [vmem:[%s2 + $0x38] sm:$0xff]
    %v1661 = vld [vmem:[%s2 + $0x40] sm:$0xff]
    %v1662 = vld [vmem:[#allocation4] sm:$0xff]
    %v1663 = vld [vmem:[#allocation4 + $0x8] sm:$0xff]
    %v1664 = vld [vmem:[#allocation4 + $0x10] sm:$0xff]
    %v1665 = vld [vmem:[#allocation4 + $0x18] sm:$0xff]
    %v1666 = vld [vmem:[#allocation4 + $0x20] sm:$0xff]
    %v1667 = vld [vmem:[#allocation4 + $0x28] sm:$0xff]
    %v1668 = vld [vmem:[#allocation4 + $0x30] sm:$0xff]
    %v1669 = vld [vmem:[#allocation4 + $0x38] sm:$0xff]
    %v1670 = vld [vmem:[#allocation4 + $0x40] sm:$0xff]
    %v1671 = vld [vmem:[#allocation4 + $0x48] sm:$0xff]
    %v1672 = vld [vmem:[#allocation4 + $0x50] sm:$0xff]
    %v1673 = vld [vmem:[#allocation4 + $0x58] sm:$0xff]
    %v1674 = vld [vmem:[%s3 + $0x30] sm:$0xff]
    %v1675 = vld [vmem:[%s3 + $0x38] sm:$0xff]
    %1677 = vset.pattern.permute.xlu0 0
    %1678 = vperm.xlu0 %1677, %v1674
    %v1679 = vpop.permute.xlu0 %1678
    %1682 = vset.pattern.permute.xlu0 0
    %1683 = vperm.xlu0 %1682, %v1675
    %v1684 = vpop.permute.xlu0 %1683
    %vm1686 = vcmask 195584
    %v1688 = vsel %vm1686, %v1660, 0
    %v1691 = vsel %vm1686, %v1661, 0
    %1693 = vmatprep.subr.mxu0 %v1663
    %1694 = vmatpush1.msra.mxu0 %v1662
    %1695 = vmatprep.subr.mxu0 %v1667
    %1696 = vmatpush1.msra.mxu0 %v1666
    %1697 = vmatprep.subr.mxu0 %v1671
    %1698 = vmatpush1.msra.mxu0 %v1670
    %1699 = vmatprep.subr.mxu0 0.0
    %1700 = vmatpush1.msra.mxu0 0.0
    %1701 = vmatprep.subr.mxu0 0.0
    %1702 = vmatpush1.msra.mxu0 0.0
    %1703 = vmatprep.subr.mxu0 0.0
    %1704 = vmatpush1.msra.mxu0 0.0
    %1705 = vmatprep.subr.mxu0 0.0
    %1706 = vmatpush1.msra.mxu0 0.0
    %1707 = vmatprep.subr.mxu0 0.0
    %1708 = vmatpush1.msra.mxu0 0.0
    %1709 = vmatprep.subr.mxu0 0.0
    %1710 = vmatpush1.msra.mxu0 0.0
    %1711 = vmatprep.subr.mxu0 0.0
    %1712 = vmatpush1.msra.mxu0 0.0
    %1713 = vmatprep.subr.mxu0 0.0
    %1714 = vmatpush1.msra.mxu0 0.0
    %1715 = vmatprep.subr.mxu0 0.0
    %1716 = vmatpush1.msra.mxu0 0.0
    %1717 = vmatprep.subr.mxu0 0.0
    %1718 = vmatpush1.msra.mxu0 0.0
    %1719 = vmatprep.subr.mxu0 0.0
    %1720 = vmatpush1.msra.mxu0 0.0
    %1721 = vmatprep.subr.mxu0 0.0
    %1722 = vmatpush1.msra.mxu0 0.0
    %1723 = vmatprep.subr.mxu0 0.0
    %1724 = vmatpush1.msra.mxu0 0.0
    %1725 = vmatprep.subr.mxu0 0.0
    %1726 = vmatpush1.msra.mxu0 0.0
    %1727 = vmatprep.subr.mxu0 0.0
    %1728 = vmatpush1.msra.mxu0 0.0
    %1729 = vmatprep.subr.mxu0 0.0
    %1730 = vmatpush1.msra.mxu0 0.0
    %1731 = vmatprep.subr.mxu0 0.0
    %1732 = vmatpush1.msra.mxu0 0.0
    %1733 = vmatprep.subr.mxu0 0.0
    %1734 = vmatpush1.msra.mxu0 0.0
    %1735 = vmatprep.subr.mxu0 0.0
    %1736 = vmatpush1.msra.mxu0 0.0
    %1737 = vmatprep.subr.mxu0 0.0
    %1738 = vmatpush1.msra.mxu0 0.0
    %1739 = vmatprep.subr.mxu0 0.0
    %1740 = vmatpush1.msra.mxu0 0.0
    %1741 = vmatprep.subr.mxu0 0.0
    %1742 = vmatpush1.msra.mxu0 0.0
    %1743 = vmatprep.subr.mxu0 0.0
    %1744 = vmatpush1.msra.mxu0 0.0
    %1745 = vmatprep.subr.mxu0 0.0
    %1746 = vmatpush1.msra.mxu0 0.0
    %1747 = vmatprep.subr.mxu0 0.0
    %1748 = vmatpush1.msra.mxu0 0.0
    %1749 = vmatprep.subr.mxu0 0.0
    %1750 = vmatpush1.msra.mxu0 0.0
    %1751 = vmatprep.subr.mxu0 0.0
    %1752 = vmatpush1.msra.mxu0 0.0
    %1753 = vmatprep.subr.mxu0 0.0
    %1754 = vmatpush1.msra.mxu0 0.0
    %1755 = vmatprep.subr.mxu0 0.0
    %1756 = vmatpush1.msra.mxu0 0.0
    %1757 = vmatprep.mubr.f32.mxu0 0.0
    %1758 = vmatmul.mubr.f32.gmra.mrb[0].mxu0 %v1688
    %v1759 = vpop.f32.mrb[0].mxu0
    %v1760 = vadd.f32 %v1679, %v1759
    %v1761 = vpop.f32.mrb[0].mxu0
    %v1762 = vadd.f32 %v1679, %v1761
    %1763 = vmatprep.mubr.f32.mxu0 0.0
    %1764 = vmatmul.mubr.f32.gmra.mrb[0].mxu0 %v1691
    %v1765 = vpop.f32.mrb[0].mxu0
    %v1766 = vadd.f32 %v1684, %v1765
    %v1767 = vpop.f32.mrb[0].mxu0
    %v1768 = vadd.f32 %v1684, %v1767
    %1769 = vdwg.mxu0
    %1770 = vmatprep.subr.mxu0 %v1665
    %1771 = vmatpush1.msra.mxu0 %v1664
    %1772 = vmatprep.subr.mxu0 %v1669
    %1773 = vmatpush1.msra.mxu0 %v1668
    %1774 = vmatprep.subr.mxu0 %v1673
    %1775 = vmatpush1.msra.mxu0 %v1672
    %1776 = vmatprep.subr.mxu0 0.0
    %1777 = vmatpush1.msra.mxu0 0.0
    %1778 = vmatprep.subr.mxu0 0.0
    %1779 = vmatpush1.msra.mxu0 0.0
    %1780 = vmatprep.subr.mxu0 0.0
    %1781 = vmatpush1.msra.mxu0 0.0
    %1782 = vmatprep.subr.mxu0 0.0
    %1783 = vmatpush1.msra.mxu0 0.0
    %1784 = vmatprep.subr.mxu0 0.0
    %1785 = vmatpush1.msra.mxu0 0.0
    %1786 = vmatprep.subr.mxu0 0.0
    %1787 = vmatpush1.msra.mxu0 0.0
    %1788 = vmatprep.subr.mxu0 0.0
    %1789 = vmatpush1.msra.mxu0 0.0
    %1790 = vmatprep.subr.mxu0 0.0
    %1791 = vmatpush1.msra.mxu0 0.0
    %1792 = vmatprep.subr.mxu0 0.0
    %1793 = vmatpush1.msra.mxu0 0.0
    %1794 = vmatprep.subr.mxu0 0.0
    %1795 = vmatpush1.msra.mxu0 0.0
    %1796 = vmatprep.subr.mxu0 0.0
    %1797 = vmatpush1.msra.mxu0 0.0
    %1798 = vmatprep.subr.mxu0 0.0
    %1799 = vmatpush1.msra.mxu0 0.0
    %1800 = vmatprep.subr.mxu0 0.0
    %1801 = vmatpush1.msra.mxu0 0.0
    %1802 = vmatprep.subr.mxu0 0.0
    %1803 = vmatpush1.msra.mxu0 0.0
    %1804 = vmatprep.subr.mxu0 0.0
    %1805 = vmatpush1.msra.mxu0 0.0
    %1806 = vmatprep.subr.mxu0 0.0
    %1807 = vmatpush1.msra.mxu0 0.0
    %1808 = vmatprep.subr.mxu0 0.0
    %1809 = vmatpush1.msra.mxu0 0.0
    %1810 = vmatprep.subr.mxu0 0.0
    %1811 = vmatpush1.msra.mxu0 0.0
    %1812 = vmatprep.subr.mxu0 0.0
    %1813 = vmatpush1.msra.mxu0 0.0
    %1814 = vmatprep.subr.mxu0 0.0
    %1815 = vmatpush1.msra.mxu0 0.0
    %1816 = vmatprep.subr.mxu0 0.0
    %1817 = vmatpush1.msra.mxu0 0.0
    %1818 = vmatprep.subr.mxu0 0.0
    %1819 = vmatpush1.msra.mxu0 0.0
    %1820 = vmatprep.subr.mxu0 0.0
    %1821 = vmatpush1.msra.mxu0 0.0
    %1822 = vmatprep.subr.mxu0 0.0
    %1823 = vmatpush1.msra.mxu0 0.0
    %1824 = vmatprep.subr.mxu0 0.0
    %1825 = vmatpush1.msra.mxu0 0.0
    %1826 = vmatprep.subr.mxu0 0.0
    %1827 = vmatpush1.msra.mxu0 0.0
    %1828 = vmatprep.subr.mxu0 0.0
    %1829 = vmatpush1.msra.mxu0 0.0
    %1830 = vmatprep.subr.mxu0 0.0
    %1831 = vmatpush1.msra.mxu0 0.0
    %1832 = vmatprep.subr.mxu0 0.0
    %1833 = vmatpush1.msra.mxu0 0.0
    %1834 = vmatprep.mubr.f32.mxu0 0.0
    %1835 = vmatmul.mubr.f32.gmra.mrb[0].mxu0 %v1688
    %v1836 = vpop.f32.mrb[0].mxu0
    %v1837 = vadd.f32 %v1679, %v1836
    %v1838 = vpop.f32.mrb[0].mxu0
    %v1839 = vadd.f32 %v1679, %v1838
    %1840 = vmatprep.mubr.f32.mxu0 0.0
    %1841 = vmatmul.mubr.f32.gmra.mrb[0].mxu0 %v1691
    %v1842 = vpop.f32.mrb[0].mxu0
    %v1843 = vadd.f32 %v1684, %v1842
    %v1844 = vpop.f32.mrb[0].mxu0
    %v1845 = vadd.f32 %v1684, %v1844
    %1846 = vdwg.mxu0
    %v1847 = vxor.u32 %v1760, 2147483648
    %v1848 = vxor.u32 %v1762, 2147483648
    %v1849 = vxor.u32 %v1837, 2147483648
    %v1850 = vxor.u32 %v1839, 2147483648
    %v1851 = vxor.u32 %v1766, 2147483648
    %v1852 = vxor.u32 %v1768, 2147483648
    %v1853 = vxor.u32 %v1843, 2147483648
    %v1854 = vxor.u32 %v1845, 2147483648
    %v1855 = vmul.f32 %v1847, 1.442695
    %v1856 = vpow.pop %v1855
    %v1857 = vmul.f32 %v1848, 1.442695
    %v1858 = vpow.pop %v1857
    %v1859 = vmul.f32 %v1849, 1.442695
    %v1860 = vpow.pop %v1859
    %v1861 = vmul.f32 %v1850, 1.442695
    %v1862 = vpow.pop %v1861
    %v1863 = vmul.f32 %v1851, 1.442695
    %v1864 = vpow.pop %v1863
    %v1865 = vmul.f32 %v1852, 1.442695
    %v1866 = vpow.pop %v1865
    %v1867 = vmul.f32 %v1853, 1.442695
    %v1868 = vpow.pop %v1867
    %v1869 = vmul.f32 %v1854, 1.442695
    %v1870 = vpow.pop %v1869
    %v1871 = vadd.f32 %v1856, 1.0
    %v1872 = vadd.f32 %v1858, 1.0
    %v1873 = vadd.f32 %v1860, 1.0
    %v1874 = vadd.f32 %v1862, 1.0
    %v1875 = vadd.f32 %v1864, 1.0
    %v1876 = vadd.f32 %v1866, 1.0
    %v1877 = vadd.f32 %v1868, 1.0
    %v1878 = vadd.f32 %v1870, 1.0
    %v1879 = vrcp.pop %v1871
    %v1880 = vmul.f32 1.0, %v1879
    %v1881 = vrcp.pop %v1872
    %v1882 = vmul.f32 1.0, %v1881
    %v1883 = vrcp.pop %v1873
    %v1884 = vmul.f32 1.0, %v1883
    %v1885 = vrcp.pop %v1874
    %v1886 = vmul.f32 1.0, %v1885
    %v1887 = vrcp.pop %v1875
    %v1888 = vmul.f32 1.0, %v1887
    %v1889 = vrcp.pop %v1876
    %v1890 = vmul.f32 1.0, %v1889
    %v1891 = vrcp.pop %v1877
    %v1892 = vmul.f32 1.0, %v1891
    %v1893 = vrcp.pop %v1878
    %v1894 = vmul.f32 1.0, %v1893
    %v1895 = vmul.f32 %v1760, %v1880
    %v1896 = vmul.f32 %v1762, %v1882
    %v1897 = vmul.f32 %v1837, %v1884
    %v1898 = vmul.f32 %v1839, %v1886
    %v1899 = vmul.f32 %v1766, %v1888
    %v1900 = vmul.f32 %v1768, %v1890
    %v1901 = vmul.f32 %v1843, %v1892
    %v1902 = vmul.f32 %v1845, %v1894
    %1903 = vst [vmem:[#allocation10] sm:$0xff] %v1895
    %1904 = vst [vmem:[#allocation10 + $0x8] sm:$0xff] %v1896
    %1905 = vst [vmem:[#allocation10 + $0x10] sm:$0xff] %v1897
    %1906 = vst [vmem:[#allocation10 + $0x18] sm:$0xff] %v1898
    %1907 = vst [vmem:[#allocation10 + $0x20] sm:$0xff] %v1899
    %1908 = vst [vmem:[#allocation10 + $0x28] sm:$0xff] %v1900
    %1909 = vst [vmem:[#allocation10 + $0x30] sm:$0xff] %v1901
    %1910 = vst [vmem:[#allocation10 + $0x38] sm:$0xff] %v1902
    // Predicated region
    $region26: #{tpu_custom_call.1} parent=1 // pred_check
      _
    $region27: #{tpu_custom_call.1} parent=1 // pred_check_branch
      %1912 = sbr.rel (0) target = $region29
    $region28: #{tpu_custom_call.1} parent=1 // pred_region
      %s1914 = ssub.s32 1024, 1024
      %1915 = vsyncadd [#allocation7], %s1914
      %s1916 = sshll.u32 [#allocation10], 4
      %s1917 = int_to_ptr.vmem [resolvable:$true] %s1916
      %1922 = dma.vmem_to_hbm [thread:$0]  %s1917, 1024, %s4, [#allocation7], 512, 512, 32
    $region29: #{tpu_custom_call.1} parent=1 // pred_fallthru
      _
    // Predicated region
    $region30: #{tpu_custom_call.1} parent=1 // pred_check
      _
    $region31: #{tpu_custom_call.1} parent=1 // pred_check_branch
      %1924 = sbr.rel (0) target = $region33
    $region32: #{tpu_custom_call.1} parent=1 // pred_region
      %1925 = dma.done [#allocation7], 1024
    $region33: #{tpu_custom_call.1} parent=1 // pred_fallthru
      _
    %1926 = vsyncpa [#allocation6], 1
    %1927 = vsyncpa [#allocation9], 1
    %1928 = vsyncpa [#allocation7], 1

</llo_original>
